<compile_context>
chip_gen: v5e
topology: v5e:2x2
jax: 0.10.0
libtpu: 0.0.40
codegen_flags: <defaults>
</compile_context>

<pallas_src>
import functools
import math

import jax
import jax.numpy as jnp
from jax.experimental import pallas as pl
from jax.experimental.pallas import tpu as pltpu


def _tree_max(slabs):
    """Pairwise max-reduce a list of equal-shape arrays (dependency depth log2 n)."""
    while len(slabs) > 1:
        nxt = [jnp.maximum(slabs[i], slabs[i + 1])
               for i in range(0, len(slabs) - 1, 2)]
        if len(slabs) % 2:
            nxt.append(slabs[-1])
        slabs = nxt
    return slabs[0]


# ----------------------------------------------------------------------------
# Fused kernel: per-head matmuls + sigmoid + voxel depth-projection +
# background blend + foreground alpha compositing + final (mask * 2 - 1)
# ----------------------------------------------------------------------------
def _fused_mask_kernel(x_ref, w_ref, b_ref, o_ref, *, D, HW, C):
    # Head column layout inside the fused (Z, O) weight (all offsets are
    # multiples of 128 -> lane-aligned views):
    #   [0, D*HW)                voxel occupancy logits  (D slabs of HW)
    #   [D*HW, +C*HW)            background              (C slabs of HW)
    #   [D*HW+C*HW, +C*HW)       foreground value        (C slabs of HW)
    #   [..., +HW)               foreground alpha        (1 slab of HW)
    vox_off = 0
    bg_off = D * HW
    val_off = bg_off + C * HW
    alpha_off = val_off + C * HW

    x = x_ref[...].astype(jnp.bfloat16)            # (B, Z) tiny; reused per head

    # ---- voxel head: dot -> bias -> tree max over depth -> ONE sigmoid
    # max_d sigmoid(l_d) == sigmoid(max_d l_d), so the 4096-column sigmoid
    # pass collapses to a 256-column one.
    vox = jnp.dot(x, w_ref[:, vox_off:vox_off + D * HW],
                  preferred_element_type=jnp.float32)
    vox = vox + b_ref[:, vox_off:vox_off + D * HW]
    occ = jax.nn.sigmoid(
        _tree_max([vox[:, d * HW:(d + 1) * HW] for d in range(D)]))
    one_m_occ = 1.0 - occ
    # voxel slab is dead here -> its vregs are freed before bg/fg are produced.
    # TODO(synk): RandomImageFromVoxGrid renders from a *random* camera pose;
    # here we use a fixed axis-aligned max-projection along the depth axis.

    # ---- background head
    bg = jax.nn.sigmoid(
        jnp.dot(x, w_ref[:, bg_off:bg_off + C * HW],
                preferred_element_type=jnp.float32)
        + b_ref[:, bg_off:bg_off + C * HW])

    # ---- foreground head (value channels + alpha as contiguous last slab)
    fg = jax.nn.sigmoid(
        jnp.dot(x, w_ref[:, val_off:alpha_off + HW],
                preferred_element_type=jnp.float32)
        + b_ref[:, val_off:alpha_off + HW])
    alpha = fg[:, C * HW:(C + 1) * HW]
    one_m_alpha = 1.0 - alpha
    # TODO(synk): the `foreground.shape[1] == 1` (alpha-only) branch of the
    # PyTorch module is not exercised by this configuration (C = 3 > 1).

    for c in range(C):
        bg_c = bg[:, c * HW:(c + 1) * HW]
        val_c = fg[:, c * HW:(c + 1) * HW]
        m = occ + one_m_occ * bg_c                       # object over background
        m = m * one_m_alpha + alpha * val_c              # alpha composite
        o_ref[:, c * HW:(c + 1) * HW] = m * 2.0 - 1.0    # [0,1] -> [-1,1]


def fused_mask_forward(x, w_all, b_all, *, D, HW, C):
    """x: (B, Z) f32, w_all: (Z, O) bf16, b_all: (1, O) f32 -> (B, C*HW) f32."""
    B, Z = x.shape
    O = w_all.shape[1]
    # Pad batch to a sublane multiple (8): full vreg/store occupancy, and the
    # fixed weight-DMA / launch cost is amortized over full sublanes.
    B_pad = max(8, ((B + 7) // 8) * 8)
    if B_pad != B:
        x = jnp.pad(x, ((0, B_pad - B), (0, 0)))
    kernel = functools.partial(_fused_mask_kernel, D=D, HW=HW, C=C)
    out = pl.pallas_call(
        kernel,
        out_shape=jax.ShapeDtypeStruct((B_pad, C * HW), jnp.float32),
        grid=(1,),
        in_specs=[
            pl.BlockSpec((B_pad, Z), lambda i: (0, 0)),
            pl.BlockSpec((Z, O), lambda i: (0, 0)),
            pl.BlockSpec((1, O), lambda i: (0, 0)),
        ],
        out_specs=pl.BlockSpec((B_pad, C * HW), lambda i: (0, 0)),
        compiler_params=pltpu.CompilerParams(dimension_semantics=("arbitrary",)),
    )(x, w_all, b_all)
    return out[:B]


# ----------------------------------------------------------------------------
# Wrapper module
# ----------------------------------------------------------------------------
class MaskGeneratorPallas:
    """JAX/Pallas port of MaskGenerator with synthetic linear sub-generators."""

    def __init__(self, key, latent_dim=32, vox_size=16, img_hw=16, channels=3):
        assert vox_size == img_hw, "voxel spatial dims must match image dims"
        self.Z = latent_dim
        self.D = vox_size
        self.H = self.W = img_hw
        self.HW = img_hw * img_hw
        self.C = channels

        ks = jax.random.split(key, 6)
        scale = 1.0 / math.sqrt(latent_dim)

        # model_gen: latent -> voxel occupancy grid (D * H * W)
        o_vox = self.D * self.HW
        w_model = scale * jax.random.normal(ks[0], (self.Z, o_vox), jnp.float32)
        b_model = 0.01 * jax.random.normal(ks[1], (1, o_vox), jnp.float32)

        # background_gen: latent -> C x H x W image
        o_bg = self.C * self.HW
        w_bg = scale * jax.random.normal(ks[2], (self.Z, o_bg), jnp.float32)
        b_bg = 0.01 * jax.random.normal(ks[3], (1, o_bg), jnp.float32)

        # foreground_gen: latent -> (C+1) x H x W image; flattened (C+1, H*W)
        # puts the alpha channel as a contiguous, lane-aligned last slab.
        o_fg = (self.C + 1) * self.HW
        w_fg = scale * jax.random.normal(ks[4], (self.Z, o_fg), jnp.float32)
        b_fg = 0.01 * jax.random.normal(ks[5], (1, o_fg), jnp.float32)

        # Fused head weights: bf16 (MXU-native), f32 bias.
        self.w_all = jnp.concatenate([w_model, w_bg, w_fg], axis=1).astype(jnp.bfloat16)
        self.b_all = jnp.concatenate([b_model, b_bg, b_fg], axis=1)

    def __call__(self, in_tensor):
        B = in_tensor.shape[0]
        flat = fused_mask_forward(
            in_tensor.astype(jnp.float32), self.w_all, self.b_all,
            D=self.D, HW=self.HW, C=self.C)
        # lane-dense (B, C*H*W) -> NCHW for the caller
        return flat.reshape(B, self.C, self.H, self.W)


if __name__ == "__main__":
    key = jax.random.PRNGKey(0)
    k_param, k_in = jax.random.split(key)

    B, Z = 2, 32
    gen = MaskGeneratorPallas(k_param, latent_dim=Z, vox_size=16, img_hw=16, channels=3)

    in_tensor = jax.random.normal(k_in, (B, Z), jnp.float32)
    out = gen(in_tensor)
    out = jax.block_until_ready(out)

    assert out.shape == (B, 3, 16, 16), out.shape
    assert out.dtype == jnp.float32
    assert bool(jnp.all(jnp.isfinite(out)))
    # output must lie in [-1, 1]: convex combinations of [0,1] values, * 2 - 1
    assert bool(jnp.all(out >= -1.0 - 1e-5)) and bool(jnp.all(out <= 1.0 + 1e-5))

    print("KERNEL_OK")
</pallas_src>

<mosaic_0001>
module attributes {stable_mosaic.version = 11 : i64} {
  func.func @_fused_mask_kernel(%arg0: i32, %arg1: memref<8x32xf32, #tpu.memory_space<vmem>>, %arg2: memref<32x5888xbf16, #tpu.memory_space<vmem>>, %arg3: memref<1x5888xf32, #tpu.memory_space<vmem>>, %arg4: memref<8x768xf32, #tpu.memory_space<vmem>>) attributes {dimension_semantics = [#tpu.dimension_semantics<arbitrary>], iteration_bounds = array<i64: 1>, scalar_prefetch = 0 : i64, scratch_operands = 0 : i64, tpu.core_type = #tpu.core_type<tc>, window_params = [{pipeline_mode = #tpu.pipeline_mode<synchronous>, transform_indices = @transform_0, window_bounds = array<i64: 8, 32>}, {pipeline_mode = #tpu.pipeline_mode<synchronous>, transform_indices = @transform_1, window_bounds = array<i64: 32, 5888>}, {pipeline_mode = #tpu.pipeline_mode<synchronous>, transform_indices = @transform_2, window_bounds = array<i64: 1, 5888>}, {pipeline_mode = #tpu.pipeline_mode<synchronous>, transform_indices = @transform_3, window_bounds = array<i64: 8, 768>}]} {
    %c0 = arith.constant 0 : index
    %c0_0 = arith.constant 0 : index
    %0 = vector.load %arg1[%c0, %c0_0] : memref<8x32xf32, #tpu.memory_space<vmem>>, vector<8x32xf32>
    %1 = arith.truncf %0 : vector<8x32xf32> to vector<8x32xbf16>
    %c0_1 = arith.constant 0 : index
    %c0_2 = arith.constant 0 : index
    %2 = vector.load %arg2[%c0_1, %c0_2] : memref<32x5888xbf16, #tpu.memory_space<vmem>>, vector<32x4096xbf16>
    %cst = arith.constant dense<0.000000e+00> : vector<8x4096xf32>
    %3 = tpu.matmul %1, %2, %cst {dimension_numbers = #tpu.dot_dimension_numbers<[1], [0], [0], [1], [0, 0, 1, 1], [], []>} : vector<8x32xbf16>, vector<32x4096xbf16>, vector<8x4096xf32> -> vector<8x4096xf32>
    %c0_3 = arith.constant 0 : index
    %c0_4 = arith.constant 0 : index
    %4 = vector.load %arg3[%c0_3, %c0_4] : memref<1x5888xf32, #tpu.memory_space<vmem>>, vector<1x4096xf32>
    %5 = vector.broadcast %4 : vector<1x4096xf32> to vector<8x4096xf32>
    %6 = arith.addf %3, %5 : vector<8x4096xf32>
    %7 = vector.extract_strided_slice %6 {offsets = [0, 0], sizes = [8, 256], strides = [1, 1]} : vector<8x4096xf32> to vector<8x256xf32>
    %8 = vector.extract_strided_slice %6 {offsets = [0, 256], sizes = [8, 256], strides = [1, 1]} : vector<8x4096xf32> to vector<8x256xf32>
    %9 = vector.extract_strided_slice %6 {offsets = [0, 512], sizes = [8, 256], strides = [1, 1]} : vector<8x4096xf32> to vector<8x256xf32>
    %10 = vector.extract_strided_slice %6 {offsets = [0, 768], sizes = [8, 256], strides = [1, 1]} : vector<8x4096xf32> to vector<8x256xf32>
    %11 = vector.extract_strided_slice %6 {offsets = [0, 1024], sizes = [8, 256], strides = [1, 1]} : vector<8x4096xf32> to vector<8x256xf32>
    %12 = vector.extract_strided_slice %6 {offsets = [0, 1280], sizes = [8, 256], strides = [1, 1]} : vector<8x4096xf32> to vector<8x256xf32>
    %13 = vector.extract_strided_slice %6 {offsets = [0, 1536], sizes = [8, 256], strides = [1, 1]} : vector<8x4096xf32> to vector<8x256xf32>
    %14 = vector.extract_strided_slice %6 {offsets = [0, 1792], sizes = [8, 256], strides = [1, 1]} : vector<8x4096xf32> to vector<8x256xf32>
    %15 = vector.extract_strided_slice %6 {offsets = [0, 2048], sizes = [8, 256], strides = [1, 1]} : vector<8x4096xf32> to vector<8x256xf32>
    %16 = vector.extract_strided_slice %6 {offsets = [0, 2304], sizes = [8, 256], strides = [1, 1]} : vector<8x4096xf32> to vector<8x256xf32>
    %17 = vector.extract_strided_slice %6 {offsets = [0, 2560], sizes = [8, 256], strides = [1, 1]} : vector<8x4096xf32> to vector<8x256xf32>
    %18 = vector.extract_strided_slice %6 {offsets = [0, 2816], sizes = [8, 256], strides = [1, 1]} : vector<8x4096xf32> to vector<8x256xf32>
    %19 = vector.extract_strided_slice %6 {offsets = [0, 3072], sizes = [8, 256], strides = [1, 1]} : vector<8x4096xf32> to vector<8x256xf32>
    %20 = vector.extract_strided_slice %6 {offsets = [0, 3328], sizes = [8, 256], strides = [1, 1]} : vector<8x4096xf32> to vector<8x256xf32>
    %21 = vector.extract_strided_slice %6 {offsets = [0, 3584], sizes = [8, 256], strides = [1, 1]} : vector<8x4096xf32> to vector<8x256xf32>
    %22 = vector.extract_strided_slice %6 {offsets = [0, 3840], sizes = [8, 256], strides = [1, 1]} : vector<8x4096xf32> to vector<8x256xf32>
    %23 = arith.maximumf %7, %8 : vector<8x256xf32>
    %24 = arith.maximumf %9, %10 : vector<8x256xf32>
    %25 = arith.maximumf %11, %12 : vector<8x256xf32>
    %26 = arith.maximumf %13, %14 : vector<8x256xf32>
    %27 = arith.maximumf %15, %16 : vector<8x256xf32>
    %28 = arith.maximumf %17, %18 : vector<8x256xf32>
    %29 = arith.maximumf %19, %20 : vector<8x256xf32>
    %30 = arith.maximumf %21, %22 : vector<8x256xf32>
    %31 = arith.maximumf %23, %24 : vector<8x256xf32>
    %32 = arith.maximumf %25, %26 : vector<8x256xf32>
    %33 = arith.maximumf %27, %28 : vector<8x256xf32>
    %34 = arith.maximumf %29, %30 : vector<8x256xf32>
    %35 = arith.maximumf %31, %32 : vector<8x256xf32>
    %36 = arith.maximumf %33, %34 : vector<8x256xf32>
    %37 = arith.maximumf %35, %36 : vector<8x256xf32>
    %38 = arith.negf %37 : vector<8x256xf32>
    %39 = math.exp %38 : vector<8x256xf32>
    %cst_5 = arith.constant 1.000000e+00 : f32
    %40 = vector.broadcast %cst_5 : f32 to vector<8x256xf32>
    %41 = arith.addf %40, %39 : vector<8x256xf32>
    %42 = arith.divf %40, %41 : vector<8x256xf32>
    %cst_6 = arith.constant 1.000000e+00 : f32
    %43 = vector.broadcast %cst_6 : f32 to vector<8x256xf32>
    %44 = arith.subf %43, %42 : vector<8x256xf32>
    %c0_7 = arith.constant 0 : index
    %c4096 = arith.constant 4096 : index
    %45 = vector.load %arg2[%c0_7, %c4096] : memref<32x5888xbf16, #tpu.memory_space<vmem>>, vector<32x768xbf16>
    %cst_8 = arith.constant dense<0.000000e+00> : vector<8x768xf32>
    %46 = tpu.matmul %1, %45, %cst_8 {dimension_numbers = #tpu.dot_dimension_numbers<[1], [0], [0], [1], [0, 0, 1, 1], [], []>} : vector<8x32xbf16>, vector<32x768xbf16>, vector<8x768xf32> -> vector<8x768xf32>
    %c0_9 = arith.constant 0 : index
    %c4096_10 = arith.constant 4096 : index
    %47 = vector.load %arg3[%c0_9, %c4096_10] : memref<1x5888xf32, #tpu.memory_space<vmem>>, vector<1x768xf32>
    %48 = vector.broadcast %47 : vector<1x768xf32> to vector<8x768xf32>
    %49 = arith.addf %46, %48 : vector<8x768xf32>
    %50 = arith.negf %49 : vector<8x768xf32>
    %51 = math.exp %50 : vector<8x768xf32>
    %cst_11 = arith.constant 1.000000e+00 : f32
    %52 = vector.broadcast %cst_11 : f32 to vector<8x768xf32>
    %53 = arith.addf %52, %51 : vector<8x768xf32>
    %54 = arith.divf %52, %53 : vector<8x768xf32>
    %c0_12 = arith.constant 0 : index
    %c4864 = arith.constant 4864 : index
    %55 = vector.load %arg2[%c0_12, %c4864] : memref<32x5888xbf16, #tpu.memory_space<vmem>>, vector<32x1024xbf16>
    %cst_13 = arith.constant dense<0.000000e+00> : vector<8x1024xf32>
    %56 = tpu.matmul %1, %55, %cst_13 {dimension_numbers = #tpu.dot_dimension_numbers<[1], [0], [0], [1], [0, 0, 1, 1], [], []>} : vector<8x32xbf16>, vector<32x1024xbf16>, vector<8x1024xf32> -> vector<8x1024xf32>
    %c0_14 = arith.constant 0 : index
    %c4864_15 = arith.constant 4864 : index
    %57 = vector.load %arg3[%c0_14, %c4864_15] : memref<1x5888xf32, #tpu.memory_space<vmem>>, vector<1x1024xf32>
    %58 = vector.broadcast %57 : vector<1x1024xf32> to vector<8x1024xf32>
    %59 = arith.addf %56, %58 : vector<8x1024xf32>
    %60 = arith.negf %59 : vector<8x1024xf32>
    %61 = math.exp %60 : vector<8x1024xf32>
    %cst_16 = arith.constant 1.000000e+00 : f32
    %62 = vector.broadcast %cst_16 : f32 to vector<8x1024xf32>
    %63 = arith.addf %62, %61 : vector<8x1024xf32>
    %64 = arith.divf %62, %63 : vector<8x1024xf32>
    %65 = vector.extract_strided_slice %64 {offsets = [0, 768], sizes = [8, 256], strides = [1, 1]} : vector<8x1024xf32> to vector<8x256xf32>
    %cst_17 = arith.constant 1.000000e+00 : f32
    %66 = vector.broadcast %cst_17 : f32 to vector<8x256xf32>
    %67 = arith.subf %66, %65 : vector<8x256xf32>
    %68 = vector.extract_strided_slice %54 {offsets = [0, 0], sizes = [8, 256], strides = [1, 1]} : vector<8x768xf32> to vector<8x256xf32>
    %69 = vector.extract_strided_slice %64 {offsets = [0, 0], sizes = [8, 256], strides = [1, 1]} : vector<8x1024xf32> to vector<8x256xf32>
    %70 = arith.mulf %44, %68 : vector<8x256xf32>
    %71 = arith.addf %42, %70 : vector<8x256xf32>
    %72 = arith.mulf %71, %67 : vector<8x256xf32>
    %73 = arith.mulf %65, %69 : vector<8x256xf32>
    %74 = arith.addf %72, %73 : vector<8x256xf32>
    %cst_18 = arith.constant 2.000000e+00 : f32
    %75 = vector.broadcast %cst_18 : f32 to vector<8x256xf32>
    %76 = arith.mulf %74, %75 : vector<8x256xf32>
    %cst_19 = arith.constant 1.000000e+00 : f32
    %77 = vector.broadcast %cst_19 : f32 to vector<8x256xf32>
    %78 = arith.subf %76, %77 : vector<8x256xf32>
    %c0_20 = arith.constant 0 : index
    %c0_21 = arith.constant 0 : index
    %79 = vector.load %arg4[%c0_20, %c0_21] : memref<8x768xf32, #tpu.memory_space<vmem>>, vector<8x256xf32>
    tpu.vector_store %arg4[%c0_20, %c0_21], %78 {strides = array<i32>} : memref<8x768xf32, #tpu.memory_space<vmem>>, vector<8x256xf32>,
    %80 = vector.extract_strided_slice %54 {offsets = [0, 256], sizes = [8, 256], strides = [1, 1]} : vector<8x768xf32> to vector<8x256xf32>
    %81 = vector.extract_strided_slice %64 {offsets = [0, 256], sizes = [8, 256], strides = [1, 1]} : vector<8x1024xf32> to vector<8x256xf32>
    %82 = arith.mulf %44, %80 : vector<8x256xf32>
    %83 = arith.addf %42, %82 : vector<8x256xf32>
    %84 = arith.mulf %83, %67 : vector<8x256xf32>
    %85 = arith.mulf %65, %81 : vector<8x256xf32>
    %86 = arith.addf %84, %85 : vector<8x256xf32>
    %cst_22 = arith.constant 2.000000e+00 : f32
    %87 = vector.broadcast %cst_22 : f32 to vector<8x256xf32>
    %88 = arith.mulf %86, %87 : vector<8x256xf32>
    %cst_23 = arith.constant 1.000000e+00 : f32
    %89 = vector.broadcast %cst_23 : f32 to vector<8x256xf32>
    %90 = arith.subf %88, %89 : vector<8x256xf32>
    %c0_24 = arith.constant 0 : index
    %c256 = arith.constant 256 : index
    %91 = vector.load %arg4[%c0_24, %c256] : memref<8x768xf32, #tpu.memory_space<vmem>>, vector<8x256xf32>
    tpu.vector_store %arg4[%c0_24, %c256], %90 {strides = array<i32>} : memref<8x768xf32, #tpu.memory_space<vmem>>, vector<8x256xf32>,
    %92 = vector.extract_strided_slice %54 {offsets = [0, 512], sizes = [8, 256], strides = [1, 1]} : vector<8x768xf32> to vector<8x256xf32>
    %93 = vector.extract_strided_slice %64 {offsets = [0, 512], sizes = [8, 256], strides = [1, 1]} : vector<8x1024xf32> to vector<8x256xf32>
    %94 = arith.mulf %44, %92 : vector<8x256xf32>
    %95 = arith.addf %42, %94 : vector<8x256xf32>
    %96 = arith.mulf %95, %67 : vector<8x256xf32>
    %97 = arith.mulf %65, %93 : vector<8x256xf32>
    %98 = arith.addf %96, %97 : vector<8x256xf32>
    %cst_25 = arith.constant 2.000000e+00 : f32
    %99 = vector.broadcast %cst_25 : f32 to vector<8x256xf32>
    %100 = arith.mulf %98, %99 : vector<8x256xf32>
    %cst_26 = arith.constant 1.000000e+00 : f32
    %101 = vector.broadcast %cst_26 : f32 to vector<8x256xf32>
    %102 = arith.subf %100, %101 : vector<8x256xf32>
    %c0_27 = arith.constant 0 : index
    %c512 = arith.constant 512 : index
    %103 = vector.load %arg4[%c0_27, %c512] : memref<8x768xf32, #tpu.memory_space<vmem>>, vector<8x256xf32>
    tpu.vector_store %arg4[%c0_27, %c512], %102 {strides = array<i32>} : memref<8x768xf32, #tpu.memory_space<vmem>>, vector<8x256xf32>,
    return
  }
  func.func @transform_0(%arg0: i32) -> (i32, i32) {
    %c0_i32 = arith.constant 0 : i32
    %c0_i32_0 = arith.constant 0 : i32
    %c0_i32_1 = arith.constant 0 : i32
    return %c0_i32, %c0_i32_0 : i32, i32
  }
  func.func @transform_1(%arg0: i32) -> (i32, i32) {
    %c0_i32 = arith.constant 0 : i32
    %c0_i32_0 = arith.constant 0 : i32
    %c0_i32_1 = arith.constant 0 : i32
    return %c0_i32, %c0_i32_0 : i32, i32
  }
  func.func @transform_2(%arg0: i32) -> (i32, i32) {
    %c0_i32 = arith.constant 0 : i32
    %c0_i32_0 = arith.constant 0 : i32
    %c0_i32_1 = arith.constant 0 : i32
    return %c0_i32, %c0_i32_0 : i32, i32
  }
  func.func @transform_3(%arg0: i32) -> (i32, i32) {
    %c0_i32 = arith.constant 0 : i32
    %c0_i32_0 = arith.constant 0 : i32
    %c0_i32_1 = arith.constant 0 : i32
    return %c0_i32, %c0_i32_0 : i32, i32
  }
}

</mosaic_0001>

<llo_original>
// kernel: tpu_custom_call.1
$region0: #{tpu_custom_call.1}
  #allocation0 [shape = 'u32[]', space=smem, size = 0x4, offset = 0x4, fixed_abs, tag = 'smem constant byte address 0x4 - core index']
  #allocation1 [shape = 'u32[72,128]{1,0:T(1,128)}', space=vmem, size = 0x9000, scoped, tag = 'internal scratch']
  %s0 = inlined_call_operand.hbm [shape: f32[8,32], index: 0, kind: input, shape index: {}]
  %s1 = inlined_call_operand.hbm [shape: bf16[32,5888], index: 1, kind: input, shape index: {}]
  %s2 = inlined_call_operand.hbm [shape: f32[1,5888], index: 2, kind: input, shape index: {}]
  %s3 = inlined_call_operand.hbm [shape: f32[8,768], index: 3, kind: output, shape index: {}]
  %s4 = sld [smem:[#allocation0]]
  $region34: #{tpu_custom_call.1} parent=0
    _
  %s6 = ssub.s32 1, %s4
  %s7 = scalar_select 0, %s6, %s4
  $region1: #{tpu_custom_call.1} parent=0
    #allocation2 [shape = 'u8[4096]{0}', space=vmem, size = 0x1000, scoped, tag = 'input window, operand 0, single buffered']
    #allocation3 [shape = 's32[1]{0}', space=sflag, size = 0x4, scoped, tag = 'scoped memory for tpu_custom_call.1']
    #allocation4 [shape = 's32[1]{0}', space=sflag, size = 0x4, scoped, tag = 'scoped memory for tpu_custom_call.1']
    #allocation5 [shape = 'u8[376832]{0}', space=vmem, size = 0x5c000, scoped, tag = 'input window, operand 1, single buffered']
    #allocation6 [shape = 's32[1]{0}', space=sflag, size = 0x4, scoped, tag = 'scoped memory for tpu_custom_call.1']
    #allocation7 [shape = 'u8[23552]{0}', space=vmem, size = 0x5c00, scoped, tag = 'input window, operand 2, single buffered']
    #allocation8 [shape = 'u8[24576]{0}', space=vmem, size = 0x6000, scoped, tag = 'output window, operand 0, single buffered']
    %8 = vsyncpa [#allocation3], 0
    %9 = vsyncpa [#allocation6], 0
    %10 = vsyncpa [#allocation4], 0
    // Predicated region
    $region2: #{tpu_custom_call.1} parent=1 // pred_check
      _
    $region3: #{tpu_custom_call.1} parent=1 // pred_check_branch
      %12 = sbr.rel (0) target = $region5
    $region4: #{tpu_custom_call.1} parent=1 // pred_region
      %14 = vsyncadd [#allocation3], 0
      %s16 = sshll.u32 %s0, 4
      %s17 = int_to_ptr.hbm [resolvable:$true] %s16
      %s18 = sshll.u32 [#allocation2], 4
      %s19 = int_to_ptr.vmem [resolvable:$true] %s18
      %21 = dma.hbm_to_vmem [thread:$0]  %s17, 128, %s19, [#allocation3]
    $region5: #{tpu_custom_call.1} parent=1 // pred_fallthru
      _
    // Predicated region
    $region6: #{tpu_custom_call.1} parent=1 // pred_check
      _
    $region7: #{tpu_custom_call.1} parent=1 // pred_check_branch
      %23 = sbr.rel (0) target = $region9
    $region8: #{tpu_custom_call.1} parent=1 // pred_region
      %25 = vsyncadd [#allocation6], 0
      %s26 = sshll.u32 %s1, 4
      %s27 = int_to_ptr.hbm [resolvable:$true] %s26
      %s28 = sshll.u32 [#allocation5], 4
      %s29 = int_to_ptr.vmem [resolvable:$true] %s28
      %34 = dma.hbm_to_vmem [thread:$0]  %s27, 11776, %s29, [#allocation6], 2944, 2944, 184
    $region9: #{tpu_custom_call.1} parent=1 // pred_fallthru
      _
    // Predicated region
    $region10: #{tpu_custom_call.1} parent=1 // pred_check
      _
    $region11: #{tpu_custom_call.1} parent=1 // pred_check_branch
      %36 = sbr.rel (0) target = $region13
    $region12: #{tpu_custom_call.1} parent=1 // pred_region
      %38 = vsyncadd [#allocation6], 0
      %s40 = sshll.u32 %s2, 4
      %s41 = int_to_ptr.hbm [resolvable:$true] %s40
      %s42 = sshll.u32 [#allocation7], 4
      %s43 = int_to_ptr.vmem [resolvable:$true] %s42
      %45 = dma.hbm_to_vmem [thread:$0]  %s41, 736, %s43, [#allocation6]
    $region13: #{tpu_custom_call.1} parent=1 // pred_fallthru
      _
    // Predicated region
    $region14: #{tpu_custom_call.1} parent=1 // pred_check
      _
    $region15: #{tpu_custom_call.1} parent=1 // pred_check_branch
      %47 = sbr.rel (0) target = $region17
    $region16: #{tpu_custom_call.1} parent=1 // pred_region
      %49 = dma.done [#allocation3], 128
    $region17: #{tpu_custom_call.1} parent=1 // pred_fallthru
      _
    // Predicated region
    $region18: #{tpu_custom_call.1} parent=1 // pred_check
      _
    $region19: #{tpu_custom_call.1} parent=1 // pred_check_branch
      %51 = sbr.rel (0) target = $region21
    $region20: #{tpu_custom_call.1} parent=1 // pred_region
      %53 = dma.done [#allocation6], 11776
    $region21: #{tpu_custom_call.1} parent=1 // pred_fallthru
      _
    // Predicated region
    $region22: #{tpu_custom_call.1} parent=1 // pred_check
      _
    $region23: #{tpu_custom_call.1} parent=1 // pred_check_branch
      %55 = sbr.rel (0) target = $region25
    $region24: #{tpu_custom_call.1} parent=1 // pred_region
      %57 = dma.done [#allocation6], 736
    $region25: #{tpu_custom_call.1} parent=1 // pred_fallthru
      _
    %v59 = vld [vmem:[#allocation2] sm:$0xff]
    %v60 = vpack.c.bf16 %v59, %v59
    %v61 = vld [vmem:[#allocation5] sm:$0xff]
    %v62 = vld [vmem:[#allocation5 + $0x8] sm:$0xff]
    %v63 = vld [vmem:[#allocation5 + $0x10] sm:$0xff]
    %v64 = vld [vmem:[#allocation5 + $0x18] sm:$0xff]
    %v65 = vld [vmem:[#allocation5 + $0x20] sm:$0xff]
    %v66 = vld [vmem:[#allocation5 + $0x28] sm:$0xff]
    %v67 = vld [vmem:[#allocation5 + $0x30] sm:$0xff]
    %v68 = vld [vmem:[#allocation5 + $0x38] sm:$0xff]
    %v69 = vld [vmem:[#allocation5 + $0x40] sm:$0xff]
    %v70 = vld [vmem:[#allocation5 + $0x48] sm:$0xff]
    %v71 = vld [vmem:[#allocation5 + $0x50] sm:$0xff]
    %v72 = vld [vmem:[#allocation5 + $0x58] sm:$0xff]
    %v73 = vld [vmem:[#allocation5 + $0x60] sm:$0xff]
    %v74 = vld [vmem:[#allocation5 + $0x68] sm:$0xff]
    %v75 = vld [vmem:[#allocation5 + $0x70] sm:$0xff]
    %v76 = vld [vmem:[#allocation5 + $0x78] sm:$0xff]
    %v77 = vld [vmem:[#allocation5 + $0xb8] sm:$0xff]
    %v78 = vld [vmem:[#allocation5 + $0xc0] sm:$0xff]
    %v79 = vld [vmem:[#allocation5 + $0xc8] sm:$0xff]
    %v80 = vld [vmem:[#allocation5 + $0xd0] sm:$0xff]
    %v81 = vld [vmem:[#allocation5 + $0xd8] sm:$0xff]
    %v82 = vld [vmem:[#allocation5 + $0xe0] sm:$0xff]
    %v83 = vld [vmem:[#allocation5 + $0xe8] sm:$0xff]
    %v84 = vld [vmem:[#allocation5 + $0xf0] sm:$0xff]
    %v85 = vld [vmem:[#allocation5 + $0xf8] sm:$0xff]
    %v86 = vld [vmem:[#allocation5 + $0x100] sm:$0xff]
    %v87 = vld [vmem:[#allocation5 + $0x108] sm:$0xff]
    %v88 = vld [vmem:[#allocation5 + $0x110] sm:$0xff]
    %v89 = vld [vmem:[#allocation5 + $0x118] sm:$0xff]
    %v90 = vld [vmem:[#allocation5 + $0x120] sm:$0xff]
    %v91 = vld [vmem:[#allocation5 + $0x128] sm:$0xff]
    %v92 = vld [vmem:[#allocation5 + $0x130] sm:$0xff]
    %v93 = vld [vmem:[#allocation5 + $0x170] sm:$0xff]
    %v94 = vld [vmem:[#allocation5 + $0x178] sm:$0xff]
    %v95 = vld [vmem:[#allocation5 + $0x180] sm:$0xff]
    %v96 = vld [vmem:[#allocation5 + $0x188] sm:$0xff]
    %v97 = vld [vmem:[#allocation5 + $0x190] sm:$0xff]
    %v98 = vld [vmem:[#allocation5 + $0x198] sm:$0xff]
    %v99 = vld [vmem:[#allocation5 + $0x1a0] sm:$0xff]
    %v100 = vld [vmem:[#allocation5 + $0x1a8] sm:$0xff]
    %v101 = vld [vmem:[#allocation5 + $0x1b0] sm:$0xff]
    %v102 = vld [vmem:[#allocation5 + $0x1b8] sm:$0xff]
    %v103 = vld [vmem:[#allocation5 + $0x1c0] sm:$0xff]
    %v104 = vld [vmem:[#allocation5 + $0x1c8] sm:$0xff]
    %v105 = vld [vmem:[#allocation5 + $0x1d0] sm:$0xff]
    %v106 = vld [vmem:[#allocation5 + $0x1d8] sm:$0xff]
    %v107 = vld [vmem:[#allocation5 + $0x1e0] sm:$0xff]
    %v108 = vld [vmem:[#allocation5 + $0x1e8] sm:$0xff]
    %v109 = vld [vmem:[#allocation5 + $0x228] sm:$0xff]
    %v110 = vld [vmem:[#allocation5 + $0x230] sm:$0xff]
    %v111 = vld [vmem:[#allocation5 + $0x238] sm:$0xff]
    %v112 = vld [vmem:[#allocation5 + $0x240] sm:$0xff]
    %v113 = vld [vmem:[#allocation5 + $0x248] sm:$0xff]
    %v114 = vld [vmem:[#allocation5 + $0x250] sm:$0xff]
    %v115 = vld [vmem:[#allocation5 + $0x258] sm:$0xff]
    %v116 = vld [vmem:[#allocation5 + $0x260] sm:$0xff]
    %v117 = vld [vmem:[#allocation5 + $0x268] sm:$0xff]
    %v118 = vld [vmem:[#allocation5 + $0x270] sm:$0xff]
    %v119 = vld [vmem:[#allocation5 + $0x278] sm:$0xff]
    %v120 = vld [vmem:[#allocation5 + $0x280] sm:$0xff]
    %v121 = vld [vmem:[#allocation5 + $0x288] sm:$0xff]
    %v122 = vld [vmem:[#allocation5 + $0x290] sm:$0xff]
    %v123 = vld [vmem:[#allocation5 + $0x298] sm:$0xff]
    %v124 = vld [vmem:[#allocation5 + $0x2a0] sm:$0xff]
    %v125 = vld [vmem:[#allocation7] sm:$0xff]
    %v126 = vld [vmem:[#allocation7 + $0x8] sm:$0xff]
    %v127 = vld [vmem:[#allocation7 + $0x10] sm:$0xff]
    %v128 = vld [vmem:[#allocation7 + $0x18] sm:$0xff]
    %v133 = vperm.slane %v125, 0
    %v134 = vperm.slane %v125, 1
    %v135 = vperm.slane %v125, 2
    %v136 = vperm.slane %v125, 3
    %v137 = vperm.slane %v125, 4
    %v138 = vperm.slane %v125, 5
    %v139 = vperm.slane %v125, 6
    %v140 = vperm.slane %v125, 7
    %v141 = vperm.slane %v126, 0
    %v142 = vperm.slane %v126, 1
    %v143 = vperm.slane %v126, 2
    %v144 = vperm.slane %v126, 3
    %v145 = vperm.slane %v126, 4
    %v146 = vperm.slane %v126, 5
    %v147 = vperm.slane %v126, 6
    %v148 = vperm.slane %v126, 7
    %v149 = vperm.slane %v127, 0
    %v150 = vperm.slane %v127, 1
    %v151 = vperm.slane %v127, 2
    %v152 = vperm.slane %v127, 3
    %v153 = vperm.slane %v127, 4
    %v154 = vperm.slane %v127, 5
    %v155 = vperm.slane %v127, 6
    %v156 = vperm.slane %v127, 7
    %v157 = vperm.slane %v128, 0
    %v158 = vperm.slane %v128, 1
    %v159 = vperm.slane %v128, 2
    %v160 = vperm.slane %v128, 3
    %v161 = vperm.slane %v128, 4
    %v162 = vperm.slane %v128, 5
    %v163 = vperm.slane %v128, 6
    %v164 = vperm.slane %v128, 7
    %v261 = vunpack.c.l.b16 %v61
    %v262 = vunpack.c.h.b16 %v61
    %v263 = vunpack.c.l.b16 %v62
    %v264 = vunpack.c.h.b16 %v62
    %v265 = vunpack.c.l.b16 %v63
    %v266 = vunpack.c.h.b16 %v63
    %v267 = vunpack.c.l.b16 %v64
    %v268 = vunpack.c.h.b16 %v64
    %v269 = vunpack.c.l.b16 %v65
    %v270 = vunpack.c.h.b16 %v65
    %v271 = vunpack.c.l.b16 %v66
    %v272 = vunpack.c.h.b16 %v66
    %v273 = vunpack.c.l.b16 %v67
    %v274 = vunpack.c.h.b16 %v67
    %v275 = vunpack.c.l.b16 %v68
    %v276 = vunpack.c.h.b16 %v68
    %v277 = vunpack.c.l.b16 %v69
    %v278 = vunpack.c.h.b16 %v69
    %v279 = vunpack.c.l.b16 %v70
    %v280 = vunpack.c.h.b16 %v70
    %v281 = vunpack.c.l.b16 %v71
    %v282 = vunpack.c.h.b16 %v71
    %v283 = vunpack.c.l.b16 %v72
    %v284 = vunpack.c.h.b16 %v72
    %v285 = vunpack.c.l.b16 %v73
    %v286 = vunpack.c.h.b16 %v73
    %v287 = vunpack.c.l.b16 %v74
    %v288 = vunpack.c.h.b16 %v74
    %v289 = vunpack.c.l.b16 %v75
    %v290 = vunpack.c.h.b16 %v75
    %v291 = vunpack.c.l.b16 %v76
    %v292 = vunpack.c.h.b16 %v76
    %v293 = vunpack.c.l.b16 %v77
    %v294 = vunpack.c.h.b16 %v77
    %v295 = vunpack.c.l.b16 %v78
    %v296 = vunpack.c.h.b16 %v78
    %v297 = vunpack.c.l.b16 %v79
    %v298 = vunpack.c.h.b16 %v79
    %v299 = vunpack.c.l.b16 %v80
    %v300 = vunpack.c.h.b16 %v80
    %v301 = vunpack.c.l.b16 %v81
    %v302 = vunpack.c.h.b16 %v81
    %v303 = vunpack.c.l.b16 %v82
    %v304 = vunpack.c.h.b16 %v82
    %v305 = vunpack.c.l.b16 %v83
    %v306 = vunpack.c.h.b16 %v83
    %v307 = vunpack.c.l.b16 %v84
    %v308 = vunpack.c.h.b16 %v84
    %v309 = vunpack.c.l.b16 %v85
    %v310 = vunpack.c.h.b16 %v85
    %v311 = vunpack.c.l.b16 %v86
    %v312 = vunpack.c.h.b16 %v86
    %v313 = vunpack.c.l.b16 %v87
    %v314 = vunpack.c.h.b16 %v87
    %v315 = vunpack.c.l.b16 %v88
    %v316 = vunpack.c.h.b16 %v88
    %v317 = vunpack.c.l.b16 %v89
    %v318 = vunpack.c.h.b16 %v89
    %v319 = vunpack.c.l.b16 %v90
    %v320 = vunpack.c.h.b16 %v90
    %v321 = vunpack.c.l.b16 %v91
    %v322 = vunpack.c.h.b16 %v91
    %v323 = vunpack.c.l.b16 %v92
    %v324 = vunpack.c.h.b16 %v92
    %v325 = vunpack.c.l.b16 %v93
    %v326 = vunpack.c.h.b16 %v93
    %v327 = vunpack.c.l.b16 %v94
    %v328 = vunpack.c.h.b16 %v94
    %v329 = vunpack.c.l.b16 %v95
    %v330 = vunpack.c.h.b16 %v95
    %v331 = vunpack.c.l.b16 %v96
    %v332 = vunpack.c.h.b16 %v96
    %v333 = vunpack.c.l.b16 %v97
    %v334 = vunpack.c.h.b16 %v97
    %v335 = vunpack.c.l.b16 %v98
    %v336 = vunpack.c.h.b16 %v98
    %v337 = vunpack.c.l.b16 %v99
    %v338 = vunpack.c.h.b16 %v99
    %v339 = vunpack.c.l.b16 %v100
    %v340 = vunpack.c.h.b16 %v100
    %v341 = vunpack.c.l.b16 %v101
    %v342 = vunpack.c.h.b16 %v101
    %v343 = vunpack.c.l.b16 %v102
    %v344 = vunpack.c.h.b16 %v102
    %v345 = vunpack.c.l.b16 %v103
    %v346 = vunpack.c.h.b16 %v103
    %v347 = vunpack.c.l.b16 %v104
    %v348 = vunpack.c.h.b16 %v104
    %v349 = vunpack.c.l.b16 %v105
    %v350 = vunpack.c.h.b16 %v105
    %v351 = vunpack.c.l.b16 %v106
    %v352 = vunpack.c.h.b16 %v106
    %v353 = vunpack.c.l.b16 %v107
    %v354 = vunpack.c.h.b16 %v107
    %v355 = vunpack.c.l.b16 %v108
    %v356 = vunpack.c.h.b16 %v108
    %v357 = vunpack.c.l.b16 %v109
    %v358 = vunpack.c.h.b16 %v109
    %v359 = vunpack.c.l.b16 %v110
    %v360 = vunpack.c.h.b16 %v110
    %v361 = vunpack.c.l.b16 %v111
    %v362 = vunpack.c.h.b16 %v111
    %v363 = vunpack.c.l.b16 %v112
    %v364 = vunpack.c.h.b16 %v112
    %v365 = vunpack.c.l.b16 %v113
    %v366 = vunpack.c.h.b16 %v113
    %v367 = vunpack.c.l.b16 %v114
    %v368 = vunpack.c.h.b16 %v114
    %v369 = vunpack.c.l.b16 %v115
    %v370 = vunpack.c.h.b16 %v115
    %v371 = vunpack.c.l.b16 %v116
    %v372 = vunpack.c.h.b16 %v116
    %v373 = vunpack.c.l.b16 %v117
    %v374 = vunpack.c.h.b16 %v117
    %v375 = vunpack.c.l.b16 %v118
    %v376 = vunpack.c.h.b16 %v118
    %v377 = vunpack.c.l.b16 %v119
    %v378 = vunpack.c.h.b16 %v119
    %v379 = vunpack.c.l.b16 %v120
    %v380 = vunpack.c.h.b16 %v120
    %v381 = vunpack.c.l.b16 %v121
    %v382 = vunpack.c.h.b16 %v121
    %v383 = vunpack.c.l.b16 %v122
    %v384 = vunpack.c.h.b16 %v122
    %v385 = vunpack.c.l.b16 %v123
    %v386 = vunpack.c.h.b16 %v123
    %v387 = vunpack.c.l.b16 %v124
    %v388 = vunpack.c.h.b16 %v124
    %v389 = vpack.c.b16 %v293, %v261
    %v390 = vpack.c.b16 %v294, %v262
    %v391 = vpack.c.b16 %v295, %v263
    %v392 = vpack.c.b16 %v296, %v264
    %v393 = vpack.c.b16 %v297, %v265
    %v394 = vpack.c.b16 %v298, %v266
    %v395 = vpack.c.b16 %v299, %v267
    %v396 = vpack.c.b16 %v300, %v268
    %v397 = vpack.c.b16 %v301, %v269
    %v398 = vpack.c.b16 %v302, %v270
    %v399 = vpack.c.b16 %v303, %v271
    %v400 = vpack.c.b16 %v304, %v272
    %v401 = vpack.c.b16 %v305, %v273
    %v402 = vpack.c.b16 %v306, %v274
    %v403 = vpack.c.b16 %v307, %v275
    %v404 = vpack.c.b16 %v308, %v276
    %v405 = vpack.c.b16 %v309, %v277
    %v406 = vpack.c.b16 %v310, %v278
    %v407 = vpack.c.b16 %v311, %v279
    %v408 = vpack.c.b16 %v312, %v280
    %v409 = vpack.c.b16 %v313, %v281
    %v410 = vpack.c.b16 %v314, %v282
    %v411 = vpack.c.b16 %v315, %v283
    %v412 = vpack.c.b16 %v316, %v284
    %v413 = vpack.c.b16 %v317, %v285
    %v414 = vpack.c.b16 %v318, %v286
    %v415 = vpack.c.b16 %v319, %v287
    %v416 = vpack.c.b16 %v320, %v288
    %v417 = vpack.c.b16 %v321, %v289
    %v418 = vpack.c.b16 %v322, %v290
    %v419 = vpack.c.b16 %v323, %v291
    %v420 = vpack.c.b16 %v324, %v292
    %v421 = vpack.c.b16 %v357, %v325
    %v422 = vpack.c.b16 %v358, %v326
    %v423 = vpack.c.b16 %v359, %v327
    %v424 = vpack.c.b16 %v360, %v328
    %v425 = vpack.c.b16 %v361, %v329
    %v426 = vpack.c.b16 %v362, %v330
    %v427 = vpack.c.b16 %v363, %v331
    %v428 = vpack.c.b16 %v364, %v332
    %v429 = vpack.c.b16 %v365, %v333
    %v430 = vpack.c.b16 %v366, %v334
    %v431 = vpack.c.b16 %v367, %v335
    %v432 = vpack.c.b16 %v368, %v336
    %v433 = vpack.c.b16 %v369, %v337
    %v434 = vpack.c.b16 %v370, %v338
    %v435 = vpack.c.b16 %v371, %v339
    %v436 = vpack.c.b16 %v372, %v340
    %v437 = vpack.c.b16 %v373, %v341
    %v438 = vpack.c.b16 %v374, %v342
    %v439 = vpack.c.b16 %v375, %v343
    %v440 = vpack.c.b16 %v376, %v344
    %v441 = vpack.c.b16 %v377, %v345
    %v442 = vpack.c.b16 %v378, %v346
    %v443 = vpack.c.b16 %v379, %v347
    %v444 = vpack.c.b16 %v380, %v348
    %v445 = vpack.c.b16 %v381, %v349
    %v446 = vpack.c.b16 %v382, %v350
    %v447 = vpack.c.b16 %v383, %v351
    %v448 = vpack.c.b16 %v384, %v352
    %v449 = vpack.c.b16 %v385, %v353
    %v450 = vpack.c.b16 %v386, %v354
    %v451 = vpack.c.b16 %v387, %v355
    %v452 = vpack.c.b16 %v388, %v356
    %vm517 = vcmask 261120
    %v519 = vsel %vm517, %v60, 0
    %521 = vmatpush.bf16.msra.mxu0 0
    %522 = vmatpush.bf16.msra.mxu0 0
    %523 = vmatpush.bf16.msra.mxu0 0
    %524 = vmatpush.bf16.msra.mxu0 0
    %525 = vmatpush.bf16.msra.mxu0 0
    %526 = vmatpush.bf16.msra.mxu0 0
    %527 = vmatpush.bf16.msra.mxu0 %v421
    %528 = vmatpush.bf16.msra.mxu0 %v389
    %529 = vmatmul.bf16.gmra.mxu0 %v519
    %v530 = vpop.f32.mrf.mxu0
    %v531 = vadd.f32 %v133, %v530
    %v532 = vpop.f32.mrf.mxu0
    %533 = vdwg.mxu0
    %534 = vmatpush.bf16.msra.mxu0 0
    %535 = vmatpush.bf16.msra.mxu0 0
    %536 = vmatpush.bf16.msra.mxu0 0
    %537 = vmatpush.bf16.msra.mxu0 0
    %538 = vmatpush.bf16.msra.mxu0 0
    %539 = vmatpush.bf16.msra.mxu0 0
    %540 = vmatpush.bf16.msra.mxu0 %v422
    %541 = vmatpush.bf16.msra.mxu0 %v390
    %542 = vmatmul.bf16.gmra.mxu0 %v519
    %v543 = vpop.f32.mrf.mxu0
    %v544 = vadd.f32 %v134, %v543
    %v545 = vpop.f32.mrf.mxu0
    %546 = vdwg.mxu0
    %547 = vmatpush.bf16.msra.mxu0 0
    %548 = vmatpush.bf16.msra.mxu0 0
    %549 = vmatpush.bf16.msra.mxu0 0
    %550 = vmatpush.bf16.msra.mxu0 0
    %551 = vmatpush.bf16.msra.mxu0 0
    %552 = vmatpush.bf16.msra.mxu0 0
    %553 = vmatpush.bf16.msra.mxu0 %v423
    %554 = vmatpush.bf16.msra.mxu0 %v391
    %555 = vmatmul.bf16.gmra.mxu0 %v519
    %v556 = vpop.f32.mrf.mxu0
    %v557 = vadd.f32 %v135, %v556
    %v558 = vpop.f32.mrf.mxu0
    %559 = vdwg.mxu0
    %560 = vmatpush.bf16.msra.mxu0 0
    %561 = vmatpush.bf16.msra.mxu0 0
    %562 = vmatpush.bf16.msra.mxu0 0
    %563 = vmatpush.bf16.msra.mxu0 0
    %564 = vmatpush.bf16.msra.mxu0 0
    %565 = vmatpush.bf16.msra.mxu0 0
    %566 = vmatpush.bf16.msra.mxu0 %v424
    %567 = vmatpush.bf16.msra.mxu0 %v392
    %568 = vmatmul.bf16.gmra.mxu0 %v519
    %v569 = vpop.f32.mrf.mxu0
    %v570 = vadd.f32 %v136, %v569
    %v571 = vpop.f32.mrf.mxu0
    %572 = vdwg.mxu0
    %573 = vmatpush.bf16.msra.mxu0 0
    %574 = vmatpush.bf16.msra.mxu0 0
    %575 = vmatpush.bf16.msra.mxu0 0
    %576 = vmatpush.bf16.msra.mxu0 0
    %577 = vmatpush.bf16.msra.mxu0 0
    %578 = vmatpush.bf16.msra.mxu0 0
    %579 = vmatpush.bf16.msra.mxu0 %v425
    %580 = vmatpush.bf16.msra.mxu0 %v393
    %581 = vmatmul.bf16.gmra.mxu0 %v519
    %v582 = vpop.f32.mrf.mxu0
    %v583 = vadd.f32 %v137, %v582
    %v584 = vpop.f32.mrf.mxu0
    %585 = vdwg.mxu0
    %586 = vmatpush.bf16.msra.mxu0 0
    %587 = vmatpush.bf16.msra.mxu0 0
    %588 = vmatpush.bf16.msra.mxu0 0
    %589 = vmatpush.bf16.msra.mxu0 0
    %590 = vmatpush.bf16.msra.mxu0 0
    %591 = vmatpush.bf16.msra.mxu0 0
    %592 = vmatpush.bf16.msra.mxu0 %v426
    %593 = vmatpush.bf16.msra.mxu0 %v394
    %594 = vmatmul.bf16.gmra.mxu0 %v519
    %v595 = vpop.f32.mrf.mxu0
    %v596 = vadd.f32 %v138, %v595
    %v597 = vpop.f32.mrf.mxu0
    %598 = vdwg.mxu0
    %599 = vmatpush.bf16.msra.mxu0 0
    %600 = vmatpush.bf16.msra.mxu0 0
    %601 = vmatpush.bf16.msra.mxu0 0
    %602 = vmatpush.bf16.msra.mxu0 0
    %603 = vmatpush.bf16.msra.mxu0 0
    %604 = vmatpush.bf16.msra.mxu0 0
    %605 = vmatpush.bf16.msra.mxu0 %v427
    %606 = vmatpush.bf16.msra.mxu0 %v395
    %607 = vmatmul.bf16.gmra.mxu0 %v519
    %v608 = vpop.f32.mrf.mxu0
    %v609 = vadd.f32 %v139, %v608
    %v610 = vpop.f32.mrf.mxu0
    %611 = vdwg.mxu0
    %612 = vmatpush.bf16.msra.mxu0 0
    %613 = vmatpush.bf16.msra.mxu0 0
    %614 = vmatpush.bf16.msra.mxu0 0
    %615 = vmatpush.bf16.msra.mxu0 0
    %616 = vmatpush.bf16.msra.mxu0 0
    %617 = vmatpush.bf16.msra.mxu0 0
    %618 = vmatpush.bf16.msra.mxu0 %v428
    %619 = vmatpush.bf16.msra.mxu0 %v396
    %620 = vmatmul.bf16.gmra.mxu0 %v519
    %v621 = vpop.f32.mrf.mxu0
    %v622 = vadd.f32 %v140, %v621
    %v623 = vpop.f32.mrf.mxu0
    %624 = vdwg.mxu0
    %625 = vmatpush.bf16.msra.mxu0 0
    %626 = vmatpush.bf16.msra.mxu0 0
    %627 = vmatpush.bf16.msra.mxu0 0
    %628 = vmatpush.bf16.msra.mxu0 0
    %629 = vmatpush.bf16.msra.mxu0 0
    %630 = vmatpush.bf16.msra.mxu0 0
    %631 = vmatpush.bf16.msra.mxu0 %v429
    %632 = vmatpush.bf16.msra.mxu0 %v397
    %633 = vmatmul.bf16.gmra.mxu0 %v519
    %v634 = vpop.f32.mrf.mxu0
    %v635 = vadd.f32 %v141, %v634
    %v636 = vpop.f32.mrf.mxu0
    %637 = vdwg.mxu0
    %638 = vmatpush.bf16.msra.mxu0 0
    %639 = vmatpush.bf16.msra.mxu0 0
    %640 = vmatpush.bf16.msra.mxu0 0
    %641 = vmatpush.bf16.msra.mxu0 0
    %642 = vmatpush.bf16.msra.mxu0 0
    %643 = vmatpush.bf16.msra.mxu0 0
    %644 = vmatpush.bf16.msra.mxu0 %v430
    %645 = vmatpush.bf16.msra.mxu0 %v398
    %646 = vmatmul.bf16.gmra.mxu0 %v519
    %v647 = vpop.f32.mrf.mxu0
    %v648 = vadd.f32 %v142, %v647
    %v649 = vpop.f32.mrf.mxu0
    %650 = vdwg.mxu0
    %651 = vmatpush.bf16.msra.mxu0 0
    %652 = vmatpush.bf16.msra.mxu0 0
    %653 = vmatpush.bf16.msra.mxu0 0
    %654 = vmatpush.bf16.msra.mxu0 0
    %655 = vmatpush.bf16.msra.mxu0 0
    %656 = vmatpush.bf16.msra.mxu0 0
    %657 = vmatpush.bf16.msra.mxu0 %v431
    %658 = vmatpush.bf16.msra.mxu0 %v399
    %659 = vmatmul.bf16.gmra.mxu0 %v519
    %v660 = vpop.f32.mrf.mxu0
    %v661 = vadd.f32 %v143, %v660
    %v662 = vpop.f32.mrf.mxu0
    %663 = vdwg.mxu0
    %664 = vmatpush.bf16.msra.mxu0 0
    %665 = vmatpush.bf16.msra.mxu0 0
    %666 = vmatpush.bf16.msra.mxu0 0
    %667 = vmatpush.bf16.msra.mxu0 0
    %668 = vmatpush.bf16.msra.mxu0 0
    %669 = vmatpush.bf16.msra.mxu0 0
    %670 = vmatpush.bf16.msra.mxu0 %v432
    %671 = vmatpush.bf16.msra.mxu0 %v400
    %672 = vmatmul.bf16.gmra.mxu0 %v519
    %v673 = vpop.f32.mrf.mxu0
    %v674 = vadd.f32 %v144, %v673
    %v675 = vpop.f32.mrf.mxu0
    %676 = vdwg.mxu0
    %677 = vmatpush.bf16.msra.mxu0 0
    %678 = vmatpush.bf16.msra.mxu0 0
    %679 = vmatpush.bf16.msra.mxu0 0
    %680 = vmatpush.bf16.msra.mxu0 0
    %681 = vmatpush.bf16.msra.mxu0 0
    %682 = vmatpush.bf16.msra.mxu0 0
    %683 = vmatpush.bf16.msra.mxu0 %v433
    %684 = vmatpush.bf16.msra.mxu0 %v401
    %685 = vmatmul.bf16.gmra.mxu0 %v519
    %v686 = vpop.f32.mrf.mxu0
    %v687 = vadd.f32 %v145, %v686
    %v688 = vpop.f32.mrf.mxu0
    %689 = vdwg.mxu0
    %690 = vmatpush.bf16.msra.mxu0 0
    %691 = vmatpush.bf16.msra.mxu0 0
    %692 = vmatpush.bf16.msra.mxu0 0
    %693 = vmatpush.bf16.msra.mxu0 0
    %694 = vmatpush.bf16.msra.mxu0 0
    %695 = vmatpush.bf16.msra.mxu0 0
    %696 = vmatpush.bf16.msra.mxu0 %v434
    %697 = vmatpush.bf16.msra.mxu0 %v402
    %698 = vmatmul.bf16.gmra.mxu0 %v519
    %v699 = vpop.f32.mrf.mxu0
    %v700 = vadd.f32 %v146, %v699
    %v701 = vpop.f32.mrf.mxu0
    %702 = vdwg.mxu0
    %703 = vmatpush.bf16.msra.mxu0 0
    %704 = vmatpush.bf16.msra.mxu0 0
    %705 = vmatpush.bf16.msra.mxu0 0
    %706 = vmatpush.bf16.msra.mxu0 0
    %707 = vmatpush.bf16.msra.mxu0 0
    %708 = vmatpush.bf16.msra.mxu0 0
    %709 = vmatpush.bf16.msra.mxu0 %v435
    %710 = vmatpush.bf16.msra.mxu0 %v403
    %711 = vmatmul.bf16.gmra.mxu0 %v519
    %v712 = vpop.f32.mrf.mxu0
    %v713 = vadd.f32 %v147, %v712
    %v714 = vpop.f32.mrf.mxu0
    %715 = vdwg.mxu0
    %716 = vmatpush.bf16.msra.mxu0 0
    %717 = vmatpush.bf16.msra.mxu0 0
    %718 = vmatpush.bf16.msra.mxu0 0
    %719 = vmatpush.bf16.msra.mxu0 0
    %720 = vmatpush.bf16.msra.mxu0 0
    %721 = vmatpush.bf16.msra.mxu0 0
    %722 = vmatpush.bf16.msra.mxu0 %v436
    %723 = vmatpush.bf16.msra.mxu0 %v404
    %724 = vmatmul.bf16.gmra.mxu0 %v519
    %v725 = vpop.f32.mrf.mxu0
    %v726 = vadd.f32 %v148, %v725
    %v727 = vpop.f32.mrf.mxu0
    %728 = vdwg.mxu0
    %729 = vmatpush.bf16.msra.mxu0 0
    %730 = vmatpush.bf16.msra.mxu0 0
    %731 = vmatpush.bf16.msra.mxu0 0
    %732 = vmatpush.bf16.msra.mxu0 0
    %733 = vmatpush.bf16.msra.mxu0 0
    %734 = vmatpush.bf16.msra.mxu0 0
    %735 = vmatpush.bf16.msra.mxu0 %v437
    %736 = vmatpush.bf16.msra.mxu0 %v405
    %737 = vmatmul.bf16.gmra.mxu0 %v519
    %v738 = vpop.f32.mrf.mxu0
    %v739 = vadd.f32 %v149, %v738
    %v740 = vpop.f32.mrf.mxu0
    %741 = vdwg.mxu0
    %742 = vmatpush.bf16.msra.mxu0 0
    %743 = vmatpush.bf16.msra.mxu0 0
    %744 = vmatpush.bf16.msra.mxu0 0
    %745 = vmatpush.bf16.msra.mxu0 0
    %746 = vmatpush.bf16.msra.mxu0 0
    %747 = vmatpush.bf16.msra.mxu0 0
    %748 = vmatpush.bf16.msra.mxu0 %v438
    %749 = vmatpush.bf16.msra.mxu0 %v406
    %750 = vmatmul.bf16.gmra.mxu0 %v519
    %v751 = vpop.f32.mrf.mxu0
    %v752 = vadd.f32 %v150, %v751
    %v753 = vpop.f32.mrf.mxu0
    %754 = vdwg.mxu0
    %755 = vmatpush.bf16.msra.mxu0 0
    %756 = vmatpush.bf16.msra.mxu0 0
    %757 = vmatpush.bf16.msra.mxu0 0
    %758 = vmatpush.bf16.msra.mxu0 0
    %759 = vmatpush.bf16.msra.mxu0 0
    %760 = vmatpush.bf16.msra.mxu0 0
    %761 = vmatpush.bf16.msra.mxu0 %v439
    %762 = vmatpush.bf16.msra.mxu0 %v407
    %763 = vmatmul.bf16.gmra.mxu0 %v519
    %v764 = vpop.f32.mrf.mxu0
    %v765 = vadd.f32 %v151, %v764
    %v766 = vpop.f32.mrf.mxu0
    %767 = vdwg.mxu0
    %768 = vmatpush.bf16.msra.mxu0 0
    %769 = vmatpush.bf16.msra.mxu0 0
    %770 = vmatpush.bf16.msra.mxu0 0
    %771 = vmatpush.bf16.msra.mxu0 0
    %772 = vmatpush.bf16.msra.mxu0 0
    %773 = vmatpush.bf16.msra.mxu0 0
    %774 = vmatpush.bf16.msra.mxu0 %v440
    %775 = vmatpush.bf16.msra.mxu0 %v408
    %776 = vmatmul.bf16.gmra.mxu0 %v519
    %v777 = vpop.f32.mrf.mxu0
    %v778 = vadd.f32 %v152, %v777
    %v779 = vpop.f32.mrf.mxu0
    %780 = vdwg.mxu0
    %781 = vmatpush.bf16.msra.mxu0 0
    %782 = vmatpush.bf16.msra.mxu0 0
    %783 = vmatpush.bf16.msra.mxu0 0
    %784 = vmatpush.bf16.msra.mxu0 0
    %785 = vmatpush.bf16.msra.mxu0 0
    %786 = vmatpush.bf16.msra.mxu0 0
    %787 = vmatpush.bf16.msra.mxu0 %v441
    %788 = vmatpush.bf16.msra.mxu0 %v409
    %789 = vmatmul.bf16.gmra.mxu0 %v519
    %v790 = vpop.f32.mrf.mxu0
    %v791 = vadd.f32 %v153, %v790
    %v792 = vpop.f32.mrf.mxu0
    %793 = vdwg.mxu0
    %794 = vmatpush.bf16.msra.mxu0 0
    %795 = vmatpush.bf16.msra.mxu0 0
    %796 = vmatpush.bf16.msra.mxu0 0
    %797 = vmatpush.bf16.msra.mxu0 0
    %798 = vmatpush.bf16.msra.mxu0 0
    %799 = vmatpush.bf16.msra.mxu0 0
    %800 = vmatpush.bf16.msra.mxu0 %v442
    %801 = vmatpush.bf16.msra.mxu0 %v410
    %802 = vmatmul.bf16.gmra.mxu0 %v519
    %v803 = vpop.f32.mrf.mxu0
    %v804 = vadd.f32 %v154, %v803
    %v805 = vpop.f32.mrf.mxu0
    %806 = vdwg.mxu0
    %807 = vmatpush.bf16.msra.mxu0 0
    %808 = vmatpush.bf16.msra.mxu0 0
    %809 = vmatpush.bf16.msra.mxu0 0
    %810 = vmatpush.bf16.msra.mxu0 0
    %811 = vmatpush.bf16.msra.mxu0 0
    %812 = vmatpush.bf16.msra.mxu0 0
    %813 = vmatpush.bf16.msra.mxu0 %v443
    %814 = vmatpush.bf16.msra.mxu0 %v411
    %815 = vmatmul.bf16.gmra.mxu0 %v519
    %v816 = vpop.f32.mrf.mxu0
    %v817 = vadd.f32 %v155, %v816
    %v818 = vpop.f32.mrf.mxu0
    %819 = vdwg.mxu0
    %820 = vmatpush.bf16.msra.mxu0 0
    %821 = vmatpush.bf16.msra.mxu0 0
    %822 = vmatpush.bf16.msra.mxu0 0
    %823 = vmatpush.bf16.msra.mxu0 0
    %824 = vmatpush.bf16.msra.mxu0 0
    %825 = vmatpush.bf16.msra.mxu0 0
    %826 = vmatpush.bf16.msra.mxu0 %v444
    %827 = vmatpush.bf16.msra.mxu0 %v412
    %828 = vmatmul.bf16.gmra.mxu0 %v519
    %v829 = vpop.f32.mrf.mxu0
    %v830 = vadd.f32 %v156, %v829
    %v831 = vpop.f32.mrf.mxu0
    %832 = vdwg.mxu0
    %833 = vmatpush.bf16.msra.mxu0 0
    %834 = vmatpush.bf16.msra.mxu0 0
    %835 = vmatpush.bf16.msra.mxu0 0
    %836 = vmatpush.bf16.msra.mxu0 0
    %837 = vmatpush.bf16.msra.mxu0 0
    %838 = vmatpush.bf16.msra.mxu0 0
    %839 = vmatpush.bf16.msra.mxu0 %v445
    %840 = vmatpush.bf16.msra.mxu0 %v413
    %841 = vmatmul.bf16.gmra.mxu0 %v519
    %v842 = vpop.f32.mrf.mxu0
    %v843 = vadd.f32 %v157, %v842
    %v844 = vpop.f32.mrf.mxu0
    %845 = vdwg.mxu0
    %846 = vmatpush.bf16.msra.mxu0 0
    %847 = vmatpush.bf16.msra.mxu0 0
    %848 = vmatpush.bf16.msra.mxu0 0
    %849 = vmatpush.bf16.msra.mxu0 0
    %850 = vmatpush.bf16.msra.mxu0 0
    %851 = vmatpush.bf16.msra.mxu0 0
    %852 = vmatpush.bf16.msra.mxu0 %v446
    %853 = vmatpush.bf16.msra.mxu0 %v414
    %854 = vmatmul.bf16.gmra.mxu0 %v519
    %v855 = vpop.f32.mrf.mxu0
    %v856 = vadd.f32 %v158, %v855
    %v857 = vpop.f32.mrf.mxu0
    %858 = vdwg.mxu0
    %859 = vmatpush.bf16.msra.mxu0 0
    %860 = vmatpush.bf16.msra.mxu0 0
    %861 = vmatpush.bf16.msra.mxu0 0
    %862 = vmatpush.bf16.msra.mxu0 0
    %863 = vmatpush.bf16.msra.mxu0 0
    %864 = vmatpush.bf16.msra.mxu0 0
    %865 = vmatpush.bf16.msra.mxu0 %v447
    %866 = vmatpush.bf16.msra.mxu0 %v415
    %867 = vmatmul.bf16.gmra.mxu0 %v519
    %v868 = vpop.f32.mrf.mxu0
    %v869 = vadd.f32 %v159, %v868
    %v870 = vpop.f32.mrf.mxu0
    %871 = vdwg.mxu0
    %872 = vmatpush.bf16.msra.mxu0 0
    %873 = vmatpush.bf16.msra.mxu0 0
    %874 = vmatpush.bf16.msra.mxu0 0
    %875 = vmatpush.bf16.msra.mxu0 0
    %876 = vmatpush.bf16.msra.mxu0 0
    %877 = vmatpush.bf16.msra.mxu0 0
    %878 = vmatpush.bf16.msra.mxu0 %v448
    %879 = vmatpush.bf16.msra.mxu0 %v416
    %880 = vmatmul.bf16.gmra.mxu0 %v519
    %v881 = vpop.f32.mrf.mxu0
    %v882 = vadd.f32 %v160, %v881
    %v883 = vpop.f32.mrf.mxu0
    %884 = vdwg.mxu0
    %885 = vmatpush.bf16.msra.mxu0 0
    %886 = vmatpush.bf16.msra.mxu0 0
    %887 = vmatpush.bf16.msra.mxu0 0
    %888 = vmatpush.bf16.msra.mxu0 0
    %889 = vmatpush.bf16.msra.mxu0 0
    %890 = vmatpush.bf16.msra.mxu0 0
    %891 = vmatpush.bf16.msra.mxu0 %v449
    %892 = vmatpush.bf16.msra.mxu0 %v417
    %893 = vmatmul.bf16.gmra.mxu0 %v519
    %v894 = vpop.f32.mrf.mxu0
    %v895 = vadd.f32 %v161, %v894
    %v896 = vpop.f32.mrf.mxu0
    %897 = vdwg.mxu0
    %898 = vmatpush.bf16.msra.mxu0 0
    %899 = vmatpush.bf16.msra.mxu0 0
    %900 = vmatpush.bf16.msra.mxu0 0
    %901 = vmatpush.bf16.msra.mxu0 0
    %902 = vmatpush.bf16.msra.mxu0 0
    %903 = vmatpush.bf16.msra.mxu0 0
    %904 = vmatpush.bf16.msra.mxu0 %v450
    %905 = vmatpush.bf16.msra.mxu0 %v418
    %906 = vmatmul.bf16.gmra.mxu0 %v519
    %v907 = vpop.f32.mrf.mxu0
    %v908 = vadd.f32 %v162, %v907
    %v909 = vpop.f32.mrf.mxu0
    %910 = vdwg.mxu0
    %911 = vmatpush.bf16.msra.mxu0 0
    %912 = vmatpush.bf16.msra.mxu0 0
    %913 = vmatpush.bf16.msra.mxu0 0
    %914 = vmatpush.bf16.msra.mxu0 0
    %915 = vmatpush.bf16.msra.mxu0 0
    %916 = vmatpush.bf16.msra.mxu0 0
    %917 = vmatpush.bf16.msra.mxu0 %v451
    %918 = vmatpush.bf16.msra.mxu0 %v419
    %919 = vmatmul.bf16.gmra.mxu0 %v519
    %v920 = vpop.f32.mrf.mxu0
    %v921 = vadd.f32 %v163, %v920
    %v922 = vpop.f32.mrf.mxu0
    %923 = vdwg.mxu0
    %924 = vmatpush.bf16.msra.mxu0 0
    %925 = vmatpush.bf16.msra.mxu0 0
    %926 = vmatpush.bf16.msra.mxu0 0
    %927 = vmatpush.bf16.msra.mxu0 0
    %928 = vmatpush.bf16.msra.mxu0 0
    %929 = vmatpush.bf16.msra.mxu0 0
    %930 = vmatpush.bf16.msra.mxu0 %v452
    %931 = vmatpush.bf16.msra.mxu0 %v420
    %932 = vmatmul.bf16.gmra.mxu0 %v519
    %v933 = vpop.f32.mrf.mxu0
    %v934 = vadd.f32 %v164, %v933
    %v935 = vpop.f32.mrf.mxu0
    %936 = vdwg.mxu0
    %v937 = vmax.f32 %v531, %v557
    %v938 = vmax.f32 %v544, %v570
    %v939 = vmax.f32 %v583, %v609
    %v940 = vmax.f32 %v596, %v622
    %v941 = vmax.f32 %v635, %v661
    %v942 = vmax.f32 %v648, %v674
    %v943 = vmax.f32 %v687, %v713
    %v944 = vmax.f32 %v700, %v726
    %v945 = vmax.f32 %v739, %v765
    %v946 = vmax.f32 %v752, %v778
    %v947 = vmax.f32 %v791, %v817
    %v948 = vmax.f32 %v804, %v830
    %v949 = vmax.f32 %v843, %v869
    %v950 = vmax.f32 %v856, %v882
    %v951 = vmax.f32 %v895, %v921
    %v952 = vmax.f32 %v908, %v934
    %v953 = vmax.f32 %v937, %v939
    %v954 = vmax.f32 %v938, %v940
    %v955 = vmax.f32 %v941, %v943
    %v956 = vmax.f32 %v942, %v944
    %v957 = vmax.f32 %v945, %v947
    %v958 = vmax.f32 %v946, %v948
    %v959 = vmax.f32 %v949, %v951
    %v960 = vmax.f32 %v950, %v952
    %v961 = vmax.f32 %v953, %v955
    %v962 = vmax.f32 %v954, %v956
    %v963 = vmax.f32 %v957, %v959
    %v964 = vmax.f32 %v958, %v960
    %v965 = vmax.f32 %v961, %v963
    %v966 = vmax.f32 %v962, %v964
    %v967 = vxor.u32 %v965, 2147483648
    %v968 = vxor.u32 %v966, 2147483648
    %v969 = vmul.f32 %v967, 1.442695
    %v970 = vpow.pop %v969
    %v971 = vmul.f32 %v968, 1.442695
    %v972 = vpow.pop %v971
    %v973 = vadd.f32 %v970, 1.0
    %v974 = vadd.f32 %v972, 1.0
    %v975 = vrcp.pop %v973
    %v976 = vmul.f32 %v973, %v975
    %v977 = vsub.f32 1.0, %v976
    %v978 = vmul.f32 %v975, %v977
    %v979 = vadd.f32 %v975, %v978
    %vm980 = vweird.f32 %v973
    %vm981 = vweird.f32 %v975
    %vm982 = vmor %vm980, %vm981
    %v983 = vsel %vm982, %v975, %v979
    %v984 = vand.u32 2147483647, %v973
    %vm985 = vcmp.eq.f32.partialorder %v984, 8.507059e+37
    %v986 = vand.u32 %v973, 2147483648
    %v987 = vor.u32 1.1754944e-38, %v986
    %v988 = vsel %vm985, %v987, %v983
    %v989 = vmul.f32 1.0, %v988
    %v990 = vrcp.pop %v974
    %v991 = vmul.f32 %v974, %v990
    %v992 = vsub.f32 1.0, %v991
    %v993 = vmul.f32 %v990, %v992
    %v994 = vadd.f32 %v990, %v993
    %vm995 = vweird.f32 %v974
    %vm996 = vweird.f32 %v990
    %vm997 = vmor %vm995, %vm996
    %v998 = vsel %vm997, %v990, %v994
    %v999 = vand.u32 2147483647, %v974
    %vm1000 = vcmp.eq.f32.partialorder %v999, 8.507059e+37
    %v1001 = vand.u32 %v974, 2147483648
    %v1002 = vor.u32 1.1754944e-38, %v1001
    %v1003 = vsel %vm1000, %v1002, %v998
    %v1004 = vmul.f32 1.0, %v1003
    %v1005 = vsub.f32 1.0, %v989
    %v1006 = vsub.f32 1.0, %v1004
    %v1007 = vld [vmem:[#allocation5 + $0x80] sm:$0xff]
    %v1008 = vld [vmem:[#allocation5 + $0x88] sm:$0xff]
    %v1009 = vld [vmem:[#allocation5 + $0x90] sm:$0xff]
    %v1010 = vld [vmem:[#allocation5 + $0x138] sm:$0xff]
    %v1011 = vld [vmem:[#allocation5 + $0x140] sm:$0xff]
    %v1012 = vld [vmem:[#allocation5 + $0x148] sm:$0xff]
    %v1013 = vld [vmem:[#allocation5 + $0x1f0] sm:$0xff]
    %v1014 = vld [vmem:[#allocation5 + $0x1f8] sm:$0xff]
    %v1015 = vld [vmem:[#allocation5 + $0x200] sm:$0xff]
    %v1016 = vld [vmem:[#allocation5 + $0x2a8] sm:$0xff]
    %v1017 = vld [vmem:[#allocation5 + $0x2b0] sm:$0xff]
    %v1018 = vld [vmem:[#allocation5 + $0x2b8] sm:$0xff]
    %v1019 = vld [vmem:[#allocation7 + $0x20] sm:$0x3f]
    %v1021 = vperm.slane %v1019, 0
    %v1022 = vperm.slane %v1019, 1
    %v1023 = vperm.slane %v1019, 2
    %v1024 = vperm.slane %v1019, 3
    %v1025 = vperm.slane %v1019, 4
    %v1026 = vperm.slane %v1019, 5
    %v1045 = vunpack.c.l.b16 %v1007
    %v1046 = vunpack.c.h.b16 %v1007
    %v1047 = vunpack.c.l.b16 %v1008
    %v1048 = vunpack.c.h.b16 %v1008
    %v1049 = vunpack.c.l.b16 %v1009
    %v1050 = vunpack.c.h.b16 %v1009
    %v1051 = vunpack.c.l.b16 %v1010
    %v1052 = vunpack.c.h.b16 %v1010
    %v1053 = vunpack.c.l.b16 %v1011
    %v1054 = vunpack.c.h.b16 %v1011
    %v1055 = vunpack.c.l.b16 %v1012
    %v1056 = vunpack.c.h.b16 %v1012
    %v1057 = vunpack.c.l.b16 %v1013
    %v1058 = vunpack.c.h.b16 %v1013
    %v1059 = vunpack.c.l.b16 %v1014
    %v1060 = vunpack.c.h.b16 %v1014
    %v1061 = vunpack.c.l.b16 %v1015
    %v1062 = vunpack.c.h.b16 %v1015
    %v1063 = vunpack.c.l.b16 %v1016
    %v1064 = vunpack.c.h.b16 %v1016
    %v1065 = vunpack.c.l.b16 %v1017
    %v1066 = vunpack.c.h.b16 %v1017
    %v1067 = vunpack.c.l.b16 %v1018
    %v1068 = vunpack.c.h.b16 %v1018
    %v1069 = vpack.c.b16 %v1051, %v1045
    %v1070 = vpack.c.b16 %v1052, %v1046
    %v1071 = vpack.c.b16 %v1053, %v1047
    %v1072 = vpack.c.b16 %v1054, %v1048
    %v1073 = vpack.c.b16 %v1055, %v1049
    %v1074 = vpack.c.b16 %v1056, %v1050
    %v1075 = vpack.c.b16 %v1063, %v1057
    %v1076 = vpack.c.b16 %v1064, %v1058
    %v1077 = vpack.c.b16 %v1065, %v1059
    %v1078 = vpack.c.b16 %v1066, %v1060
    %v1079 = vpack.c.b16 %v1067, %v1061
    %v1080 = vpack.c.b16 %v1068, %v1062
    %1093 = vmatpush.bf16.msra.mxu0 0
    %1094 = vmatpush.bf16.msra.mxu0 0
    %1095 = vmatpush.bf16.msra.mxu0 0
    %1096 = vmatpush.bf16.msra.mxu0 0
    %1097 = vmatpush.bf16.msra.mxu0 0
    %1098 = vmatpush.bf16.msra.mxu0 0
    %1099 = vmatpush.bf16.msra.mxu0 %v1075
    %1100 = vmatpush.bf16.msra.mxu0 %v1069
    %1101 = vmatmul.bf16.gmra.mxu0 %v519
    %v1102 = vpop.f32.mrf.mxu0
    %v1103 = vadd.f32 %v1021, %v1102
    %v1104 = vpop.f32.mrf.mxu0
    %1105 = vdwg.mxu0
    %1106 = vmatpush.bf16.msra.mxu0 0
    %1107 = vmatpush.bf16.msra.mxu0 0
    %1108 = vmatpush.bf16.msra.mxu0 0
    %1109 = vmatpush.bf16.msra.mxu0 0
    %1110 = vmatpush.bf16.msra.mxu0 0
    %1111 = vmatpush.bf16.msra.mxu0 0
    %1112 = vmatpush.bf16.msra.mxu0 %v1076
    %1113 = vmatpush.bf16.msra.mxu0 %v1070
    %1114 = vmatmul.bf16.gmra.mxu0 %v519
    %v1115 = vpop.f32.mrf.mxu0
    %v1116 = vadd.f32 %v1022, %v1115
    %v1117 = vpop.f32.mrf.mxu0
    %1118 = vdwg.mxu0
    %1119 = vmatpush.bf16.msra.mxu0 0
    %1120 = vmatpush.bf16.msra.mxu0 0
    %1121 = vmatpush.bf16.msra.mxu0 0
    %1122 = vmatpush.bf16.msra.mxu0 0
    %1123 = vmatpush.bf16.msra.mxu0 0
    %1124 = vmatpush.bf16.msra.mxu0 0
    %1125 = vmatpush.bf16.msra.mxu0 %v1077
    %1126 = vmatpush.bf16.msra.mxu0 %v1071
    %1127 = vmatmul.bf16.gmra.mxu0 %v519
    %v1128 = vpop.f32.mrf.mxu0
    %v1129 = vadd.f32 %v1023, %v1128
    %v1130 = vpop.f32.mrf.mxu0
    %1131 = vdwg.mxu0
    %1132 = vmatpush.bf16.msra.mxu0 0
    %1133 = vmatpush.bf16.msra.mxu0 0
    %1134 = vmatpush.bf16.msra.mxu0 0
    %1135 = vmatpush.bf16.msra.mxu0 0
    %1136 = vmatpush.bf16.msra.mxu0 0
    %1137 = vmatpush.bf16.msra.mxu0 0
    %1138 = vmatpush.bf16.msra.mxu0 %v1078
    %1139 = vmatpush.bf16.msra.mxu0 %v1072
    %1140 = vmatmul.bf16.gmra.mxu0 %v519
    %v1141 = vpop.f32.mrf.mxu0
    %v1142 = vadd.f32 %v1024, %v1141
    %v1143 = vpop.f32.mrf.mxu0
    %1144 = vdwg.mxu0
    %1145 = vmatpush.bf16.msra.mxu0 0
    %1146 = vmatpush.bf16.msra.mxu0 0
    %1147 = vmatpush.bf16.msra.mxu0 0
    %1148 = vmatpush.bf16.msra.mxu0 0
    %1149 = vmatpush.bf16.msra.mxu0 0
    %1150 = vmatpush.bf16.msra.mxu0 0
    %1151 = vmatpush.bf16.msra.mxu0 %v1079
    %1152 = vmatpush.bf16.msra.mxu0 %v1073
    %1153 = vmatmul.bf16.gmra.mxu0 %v519
    %v1154 = vpop.f32.mrf.mxu0
    %v1155 = vadd.f32 %v1025, %v1154
    %v1156 = vpop.f32.mrf.mxu0
    %1157 = vdwg.mxu0
    %1158 = vmatpush.bf16.msra.mxu0 0
    %1159 = vmatpush.bf16.msra.mxu0 0
    %1160 = vmatpush.bf16.msra.mxu0 0
    %1161 = vmatpush.bf16.msra.mxu0 0
    %1162 = vmatpush.bf16.msra.mxu0 0
    %1163 = vmatpush.bf16.msra.mxu0 0
    %1164 = vmatpush.bf16.msra.mxu0 %v1080
    %1165 = vmatpush.bf16.msra.mxu0 %v1074
    %1166 = vmatmul.bf16.gmra.mxu0 %v519
    %v1167 = vpop.f32.mrf.mxu0
    %v1168 = vadd.f32 %v1026, %v1167
    %v1169 = vpop.f32.mrf.mxu0
    %1170 = vdwg.mxu0
    %v1171 = vxor.u32 %v1103, 2147483648
    %v1172 = vxor.u32 %v1116, 2147483648
    %v1173 = vxor.u32 %v1129, 2147483648
    %v1174 = vxor.u32 %v1142, 2147483648
    %v1175 = vxor.u32 %v1155, 2147483648
    %v1176 = vxor.u32 %v1168, 2147483648
    %v1177 = vmul.f32 %v1171, 1.442695
    %v1178 = vpow.pop %v1177
    %v1179 = vmul.f32 %v1172, 1.442695
    %v1180 = vpow.pop %v1179
    %v1181 = vmul.f32 %v1173, 1.442695
    %v1182 = vpow.pop %v1181
    %v1183 = vmul.f32 %v1174, 1.442695
    %v1184 = vpow.pop %v1183
    %v1185 = vmul.f32 %v1175, 1.442695
    %v1186 = vpow.pop %v1185
    %v1187 = vmul.f32 %v1176, 1.442695
    %v1188 = vpow.pop %v1187
    %v1189 = vadd.f32 %v1178, 1.0
    %v1190 = vadd.f32 %v1180, 1.0
    %v1191 = vadd.f32 %v1182, 1.0
    %v1192 = vadd.f32 %v1184, 1.0
    %v1193 = vadd.f32 %v1186, 1.0
    %v1194 = vadd.f32 %v1188, 1.0
    %v1195 = vrcp.pop %v1189
    %v1196 = vmul.f32 %v1189, %v1195
    %v1197 = vsub.f32 1.0, %v1196
    %v1198 = vmul.f32 %v1195, %v1197
    %v1199 = vadd.f32 %v1195, %v1198
    %vm1200 = vweird.f32 %v1189
    %vm1201 = vweird.f32 %v1195
    %vm1202 = vmor %vm1200, %vm1201
    %v1203 = vsel %vm1202, %v1195, %v1199
    %v1204 = vand.u32 2147483647, %v1189
    %vm1205 = vcmp.eq.f32.partialorder %v1204, 8.507059e+37
    %v1206 = vand.u32 %v1189, 2147483648
    %v1207 = vor.u32 1.1754944e-38, %v1206
    %v1208 = vsel %vm1205, %v1207, %v1203
    %v1209 = vmul.f32 1.0, %v1208
    %v1210 = vrcp.pop %v1190
    %v1211 = vmul.f32 %v1190, %v1210
    %v1212 = vsub.f32 1.0, %v1211
    %v1213 = vmul.f32 %v1210, %v1212
    %v1214 = vadd.f32 %v1210, %v1213
    %vm1215 = vweird.f32 %v1190
    %vm1216 = vweird.f32 %v1210
    %vm1217 = vmor %vm1215, %vm1216
    %v1218 = vsel %vm1217, %v1210, %v1214
    %v1219 = vand.u32 2147483647, %v1190
    %vm1220 = vcmp.eq.f32.partialorder %v1219, 8.507059e+37
    %v1221 = vand.u32 %v1190, 2147483648
    %v1222 = vor.u32 1.1754944e-38, %v1221
    %v1223 = vsel %vm1220, %v1222, %v1218
    %v1224 = vmul.f32 1.0, %v1223
    %v1225 = vrcp.pop %v1191
    %v1226 = vmul.f32 %v1191, %v1225
    %v1227 = vsub.f32 1.0, %v1226
    %v1228 = vmul.f32 %v1225, %v1227
    %v1229 = vadd.f32 %v1225, %v1228
    %vm1230 = vweird.f32 %v1191
    %vm1231 = vweird.f32 %v1225
    %vm1232 = vmor %vm1230, %vm1231
    %v1233 = vsel %vm1232, %v1225, %v1229
    %v1234 = vand.u32 2147483647, %v1191
    %vm1235 = vcmp.eq.f32.partialorder %v1234, 8.507059e+37
    %v1236 = vand.u32 %v1191, 2147483648
    %v1237 = vor.u32 1.1754944e-38, %v1236
    %v1238 = vsel %vm1235, %v1237, %v1233
    %v1239 = vmul.f32 1.0, %v1238
    %v1240 = vrcp.pop %v1192
    %v1241 = vmul.f32 %v1192, %v1240
    %v1242 = vsub.f32 1.0, %v1241
    %v1243 = vmul.f32 %v1240, %v1242
    %v1244 = vadd.f32 %v1240, %v1243
    %vm1245 = vweird.f32 %v1192
    %vm1246 = vweird.f32 %v1240
    %vm1247 = vmor %vm1245, %vm1246
    %v1248 = vsel %vm1247, %v1240, %v1244
    %v1249 = vand.u32 2147483647, %v1192
    %vm1250 = vcmp.eq.f32.partialorder %v1249, 8.507059e+37
    %v1251 = vand.u32 %v1192, 2147483648
    %v1252 = vor.u32 1.1754944e-38, %v1251
    %v1253 = vsel %vm1250, %v1252, %v1248
    %v1254 = vmul.f32 1.0, %v1253
    %v1255 = vrcp.pop %v1193
    %v1256 = vmul.f32 %v1193, %v1255
    %v1257 = vsub.f32 1.0, %v1256
    %v1258 = vmul.f32 %v1255, %v1257
    %v1259 = vadd.f32 %v1255, %v1258
    %vm1260 = vweird.f32 %v1193
    %vm1261 = vweird.f32 %v1255
    %vm1262 = vmor %vm1260, %vm1261
    %v1263 = vsel %vm1262, %v1255, %v1259
    %v1264 = vand.u32 2147483647, %v1193
    %vm1265 = vcmp.eq.f32.partialorder %v1264, 8.507059e+37
    %v1266 = vand.u32 %v1193, 2147483648
    %v1267 = vor.u32 1.1754944e-38, %v1266
    %v1268 = vsel %vm1265, %v1267, %v1263
    %v1269 = vmul.f32 1.0, %v1268
    %v1270 = vrcp.pop %v1194
    %v1271 = vmul.f32 %v1194, %v1270
    %v1272 = vsub.f32 1.0, %v1271
    %v1273 = vmul.f32 %v1270, %v1272
    %v1274 = vadd.f32 %v1270, %v1273
    %vm1275 = vweird.f32 %v1194
    %vm1276 = vweird.f32 %v1270
    %vm1277 = vmor %vm1275, %vm1276
    %v1278 = vsel %vm1277, %v1270, %v1274
    %v1279 = vand.u32 2147483647, %v1194
    %vm1280 = vcmp.eq.f32.partialorder %v1279, 8.507059e+37
    %v1281 = vand.u32 %v1194, 2147483648
    %v1282 = vor.u32 1.1754944e-38, %v1281
    %v1283 = vsel %vm1280, %v1282, %v1278
    %v1284 = vmul.f32 1.0, %v1283
    %v1285 = vld [vmem:[#allocation5 + $0x98] sm:$0xff]
    %v1286 = vld [vmem:[#allocation5 + $0xa0] sm:$0xff]
    %v1287 = vld [vmem:[#allocation5 + $0xa8] sm:$0xff]
    %v1288 = vld [vmem:[#allocation5 + $0xb0] sm:$0xff]
    %v1289 = vld [vmem:[#allocation5 + $0x150] sm:$0xff]
    %v1290 = vld [vmem:[#allocation5 + $0x158] sm:$0xff]
    %v1291 = vld [vmem:[#allocation5 + $0x160] sm:$0xff]
    %v1292 = vld [vmem:[#allocation5 + $0x168] sm:$0xff]
    %v1293 = vld [vmem:[#allocation5 + $0x208] sm:$0xff]
    %v1294 = vld [vmem:[#allocation5 + $0x210] sm:$0xff]
    %v1295 = vld [vmem:[#allocation5 + $0x218] sm:$0xff]
    %v1296 = vld [vmem:[#allocation5 + $0x220] sm:$0xff]
    %v1297 = vld [vmem:[#allocation5 + $0x2c0] sm:$0xff]
    %v1298 = vld [vmem:[#allocation5 + $0x2c8] sm:$0xff]
    %v1299 = vld [vmem:[#allocation5 + $0x2d0] sm:$0xff]
    %v1300 = vld [vmem:[#allocation5 + $0x2d8] sm:$0xff]
    %v1301 = vld [vmem:[#allocation7 + $0x26] sm:$0xff]
    %v1303 = vperm.slane %v1301, 0
    %v1304 = vperm.slane %v1301, 1
    %v1305 = vperm.slane %v1301, 2
    %v1306 = vperm.slane %v1301, 3
    %v1307 = vperm.slane %v1301, 4
    %v1308 = vperm.slane %v1301, 5
    %v1309 = vperm.slane %v1301, 6
    %v1310 = vperm.slane %v1301, 7
    %v1335 = vunpack.c.l.b16 %v1285
    %v1336 = vunpack.c.h.b16 %v1285
    %v1337 = vunpack.c.l.b16 %v1286
    %v1338 = vunpack.c.h.b16 %v1286
    %v1339 = vunpack.c.l.b16 %v1287
    %v1340 = vunpack.c.h.b16 %v1287
    %v1341 = vunpack.c.l.b16 %v1288
    %v1342 = vunpack.c.h.b16 %v1288
    %v1343 = vunpack.c.l.b16 %v1289
    %v1344 = vunpack.c.h.b16 %v1289
    %v1345 = vunpack.c.l.b16 %v1290
    %v1346 = vunpack.c.h.b16 %v1290
    %v1347 = vunpack.c.l.b16 %v1291
    %v1348 = vunpack.c.h.b16 %v1291
    %v1349 = vunpack.c.l.b16 %v1292
    %v1350 = vunpack.c.h.b16 %v1292
    %v1351 = vunpack.c.l.b16 %v1293
    %v1352 = vunpack.c.h.b16 %v1293
    %v1353 = vunpack.c.l.b16 %v1294
    %v1354 = vunpack.c.h.b16 %v1294
    %v1355 = vunpack.c.l.b16 %v1295
    %v1356 = vunpack.c.h.b16 %v1295
    %v1357 = vunpack.c.l.b16 %v1296
    %v1358 = vunpack.c.h.b16 %v1296
    %v1359 = vunpack.c.l.b16 %v1297
    %v1360 = vunpack.c.h.b16 %v1297
    %v1361 = vunpack.c.l.b16 %v1298
    %v1362 = vunpack.c.h.b16 %v1298
    %v1363 = vunpack.c.l.b16 %v1299
    %v1364 = vunpack.c.h.b16 %v1299
    %v1365 = vunpack.c.l.b16 %v1300
    %v1366 = vunpack.c.h.b16 %v1300
    %v1367 = vpack.c.b16 %v1343, %v1335
    %v1368 = vpack.c.b16 %v1344, %v1336
    %v1369 = vpack.c.b16 %v1345, %v1337
    %v1370 = vpack.c.b16 %v1346, %v1338
    %v1371 = vpack.c.b16 %v1347, %v1339
    %v1372 = vpack.c.b16 %v1348, %v1340
    %v1373 = vpack.c.b16 %v1349, %v1341
    %v1374 = vpack.c.b16 %v1350, %v1342
    %v1375 = vpack.c.b16 %v1359, %v1351
    %v1376 = vpack.c.b16 %v1360, %v1352
    %v1377 = vpack.c.b16 %v1361, %v1353
    %v1378 = vpack.c.b16 %v1362, %v1354
    %v1379 = vpack.c.b16 %v1363, %v1355
    %v1380 = vpack.c.b16 %v1364, %v1356
    %v1381 = vpack.c.b16 %v1365, %v1357
    %v1382 = vpack.c.b16 %v1366, %v1358
    %1399 = vmatpush.bf16.msra.mxu0 0
    %1400 = vmatpush.bf16.msra.mxu0 0
    %1401 = vmatpush.bf16.msra.mxu0 0
    %1402 = vmatpush.bf16.msra.mxu0 0
    %1403 = vmatpush.bf16.msra.mxu0 0
    %1404 = vmatpush.bf16.msra.mxu0 0
    %1405 = vmatpush.bf16.msra.mxu0 %v1375
    %1406 = vmatpush.bf16.msra.mxu0 %v1367
    %1407 = vmatmul.bf16.gmra.mxu0 %v519
    %v1408 = vpop.f32.mrf.mxu0
    %v1409 = vadd.f32 %v1303, %v1408
    %v1410 = vpop.f32.mrf.mxu0
    %1411 = vdwg.mxu0
    %1412 = vmatpush.bf16.msra.mxu0 0
    %1413 = vmatpush.bf16.msra.mxu0 0
    %1414 = vmatpush.bf16.msra.mxu0 0
    %1415 = vmatpush.bf16.msra.mxu0 0
    %1416 = vmatpush.bf16.msra.mxu0 0
    %1417 = vmatpush.bf16.msra.mxu0 0
    %1418 = vmatpush.bf16.msra.mxu0 %v1376
    %1419 = vmatpush.bf16.msra.mxu0 %v1368
    %1420 = vmatmul.bf16.gmra.mxu0 %v519
    %v1421 = vpop.f32.mrf.mxu0
    %v1422 = vadd.f32 %v1304, %v1421
    %v1423 = vpop.f32.mrf.mxu0
    %1424 = vdwg.mxu0
    %1425 = vmatpush.bf16.msra.mxu0 0
    %1426 = vmatpush.bf16.msra.mxu0 0
    %1427 = vmatpush.bf16.msra.mxu0 0
    %1428 = vmatpush.bf16.msra.mxu0 0
    %1429 = vmatpush.bf16.msra.mxu0 0
    %1430 = vmatpush.bf16.msra.mxu0 0
    %1431 = vmatpush.bf16.msra.mxu0 %v1377
    %1432 = vmatpush.bf16.msra.mxu0 %v1369
    %1433 = vmatmul.bf16.gmra.mxu0 %v519
    %v1434 = vpop.f32.mrf.mxu0
    %v1435 = vadd.f32 %v1305, %v1434
    %v1436 = vpop.f32.mrf.mxu0
    %1437 = vdwg.mxu0
    %1438 = vmatpush.bf16.msra.mxu0 0
    %1439 = vmatpush.bf16.msra.mxu0 0
    %1440 = vmatpush.bf16.msra.mxu0 0
    %1441 = vmatpush.bf16.msra.mxu0 0
    %1442 = vmatpush.bf16.msra.mxu0 0
    %1443 = vmatpush.bf16.msra.mxu0 0
    %1444 = vmatpush.bf16.msra.mxu0 %v1378
    %1445 = vmatpush.bf16.msra.mxu0 %v1370
    %1446 = vmatmul.bf16.gmra.mxu0 %v519
    %v1447 = vpop.f32.mrf.mxu0
    %v1448 = vadd.f32 %v1306, %v1447
    %v1449 = vpop.f32.mrf.mxu0
    %1450 = vdwg.mxu0
    %1451 = vmatpush.bf16.msra.mxu0 0
    %1452 = vmatpush.bf16.msra.mxu0 0
    %1453 = vmatpush.bf16.msra.mxu0 0
    %1454 = vmatpush.bf16.msra.mxu0 0
    %1455 = vmatpush.bf16.msra.mxu0 0
    %1456 = vmatpush.bf16.msra.mxu0 0
    %1457 = vmatpush.bf16.msra.mxu0 %v1379
    %1458 = vmatpush.bf16.msra.mxu0 %v1371
    %1459 = vmatmul.bf16.gmra.mxu0 %v519
    %v1460 = vpop.f32.mrf.mxu0
    %v1461 = vadd.f32 %v1307, %v1460
    %v1462 = vpop.f32.mrf.mxu0
    %1463 = vdwg.mxu0
    %1464 = vmatpush.bf16.msra.mxu0 0
    %1465 = vmatpush.bf16.msra.mxu0 0
    %1466 = vmatpush.bf16.msra.mxu0 0
    %1467 = vmatpush.bf16.msra.mxu0 0
    %1468 = vmatpush.bf16.msra.mxu0 0
    %1469 = vmatpush.bf16.msra.mxu0 0
    %1470 = vmatpush.bf16.msra.mxu0 %v1380
    %1471 = vmatpush.bf16.msra.mxu0 %v1372
    %1472 = vmatmul.bf16.gmra.mxu0 %v519
    %v1473 = vpop.f32.mrf.mxu0
    %v1474 = vadd.f32 %v1308, %v1473
    %v1475 = vpop.f32.mrf.mxu0
    %1476 = vdwg.mxu0
    %1477 = vmatpush.bf16.msra.mxu0 0
    %1478 = vmatpush.bf16.msra.mxu0 0
    %1479 = vmatpush.bf16.msra.mxu0 0
    %1480 = vmatpush.bf16.msra.mxu0 0
    %1481 = vmatpush.bf16.msra.mxu0 0
    %1482 = vmatpush.bf16.msra.mxu0 0
    %1483 = vmatpush.bf16.msra.mxu0 %v1381
    %1484 = vmatpush.bf16.msra.mxu0 %v1373
    %1485 = vmatmul.bf16.gmra.mxu0 %v519
    %v1486 = vpop.f32.mrf.mxu0
    %v1487 = vadd.f32 %v1309, %v1486
    %v1488 = vpop.f32.mrf.mxu0
    %1489 = vdwg.mxu0
    %1490 = vmatpush.bf16.msra.mxu0 0
    %1491 = vmatpush.bf16.msra.mxu0 0
    %1492 = vmatpush.bf16.msra.mxu0 0
    %1493 = vmatpush.bf16.msra.mxu0 0
    %1494 = vmatpush.bf16.msra.mxu0 0
    %1495 = vmatpush.bf16.msra.mxu0 0
    %1496 = vmatpush.bf16.msra.mxu0 %v1382
    %1497 = vmatpush.bf16.msra.mxu0 %v1374
    %1498 = vmatmul.bf16.gmra.mxu0 %v519
    %v1499 = vpop.f32.mrf.mxu0
    %v1500 = vadd.f32 %v1310, %v1499
    %v1501 = vpop.f32.mrf.mxu0
    %1502 = vdwg.mxu0
    %v1503 = vxor.u32 %v1409, 2147483648
    %v1504 = vxor.u32 %v1422, 2147483648
    %v1505 = vxor.u32 %v1435, 2147483648
    %v1506 = vxor.u32 %v1448, 2147483648
    %v1507 = vxor.u32 %v1461, 2147483648
    %v1508 = vxor.u32 %v1474, 2147483648
    %v1509 = vxor.u32 %v1487, 2147483648
    %v1510 = vxor.u32 %v1500, 2147483648
    %v1511 = vmul.f32 %v1503, 1.442695
    %v1512 = vpow.pop %v1511
    %v1513 = vmul.f32 %v1504, 1.442695
    %v1514 = vpow.pop %v1513
    %v1515 = vmul.f32 %v1505, 1.442695
    %v1516 = vpow.pop %v1515
    %v1517 = vmul.f32 %v1506, 1.442695
    %v1518 = vpow.pop %v1517
    %v1519 = vmul.f32 %v1507, 1.442695
    %v1520 = vpow.pop %v1519
    %v1521 = vmul.f32 %v1508, 1.442695
    %v1522 = vpow.pop %v1521
    %v1523 = vmul.f32 %v1509, 1.442695
    %v1524 = vpow.pop %v1523
    %v1525 = vmul.f32 %v1510, 1.442695
    %v1526 = vpow.pop %v1525
    %v1527 = vadd.f32 %v1512, 1.0
    %v1528 = vadd.f32 %v1514, 1.0
    %v1529 = vadd.f32 %v1516, 1.0
    %v1530 = vadd.f32 %v1518, 1.0
    %v1531 = vadd.f32 %v1520, 1.0
    %v1532 = vadd.f32 %v1522, 1.0
    %v1533 = vadd.f32 %v1524, 1.0
    %v1534 = vadd.f32 %v1526, 1.0
    %v1535 = vrcp.pop %v1527
    %v1536 = vmul.f32 %v1527, %v1535
    %v1537 = vsub.f32 1.0, %v1536
    %v1538 = vmul.f32 %v1535, %v1537
    %v1539 = vadd.f32 %v1535, %v1538
    %vm1540 = vweird.f32 %v1527
    %vm1541 = vweird.f32 %v1535
    %vm1542 = vmor %vm1540, %vm1541
    %v1543 = vsel %vm1542, %v1535, %v1539
    %v1544 = vand.u32 2147483647, %v1527
    %vm1545 = vcmp.eq.f32.partialorder %v1544, 8.507059e+37
    %v1546 = vand.u32 %v1527, 2147483648
    %v1547 = vor.u32 1.1754944e-38, %v1546
    %v1548 = vsel %vm1545, %v1547, %v1543
    %v1549 = vmul.f32 1.0, %v1548
    %v1550 = vrcp.pop %v1528
    %v1551 = vmul.f32 %v1528, %v1550
    %v1552 = vsub.f32 1.0, %v1551
    %v1553 = vmul.f32 %v1550, %v1552
    %v1554 = vadd.f32 %v1550, %v1553
    %vm1555 = vweird.f32 %v1528
    %vm1556 = vweird.f32 %v1550
    %vm1557 = vmor %vm1555, %vm1556
    %v1558 = vsel %vm1557, %v1550, %v1554
    %v1559 = vand.u32 2147483647, %v1528
    %vm1560 = vcmp.eq.f32.partialorder %v1559, 8.507059e+37
    %v1561 = vand.u32 %v1528, 2147483648
    %v1562 = vor.u32 1.1754944e-38, %v1561
    %v1563 = vsel %vm1560, %v1562, %v1558
    %v1564 = vmul.f32 1.0, %v1563
    %v1565 = vrcp.pop %v1529
    %v1566 = vmul.f32 %v1529, %v1565
    %v1567 = vsub.f32 1.0, %v1566
    %v1568 = vmul.f32 %v1565, %v1567
    %v1569 = vadd.f32 %v1565, %v1568
    %vm1570 = vweird.f32 %v1529
    %vm1571 = vweird.f32 %v1565
    %vm1572 = vmor %vm1570, %vm1571
    %v1573 = vsel %vm1572, %v1565, %v1569
    %v1574 = vand.u32 2147483647, %v1529
    %vm1575 = vcmp.eq.f32.partialorder %v1574, 8.507059e+37
    %v1576 = vand.u32 %v1529, 2147483648
    %v1577 = vor.u32 1.1754944e-38, %v1576
    %v1578 = vsel %vm1575, %v1577, %v1573
    %v1579 = vmul.f32 1.0, %v1578
    %v1580 = vrcp.pop %v1530
    %v1581 = vmul.f32 %v1530, %v1580
    %v1582 = vsub.f32 1.0, %v1581
    %v1583 = vmul.f32 %v1580, %v1582
    %v1584 = vadd.f32 %v1580, %v1583
    %vm1585 = vweird.f32 %v1530
    %vm1586 = vweird.f32 %v1580
    %vm1587 = vmor %vm1585, %vm1586
    %v1588 = vsel %vm1587, %v1580, %v1584
    %v1589 = vand.u32 2147483647, %v1530
    %vm1590 = vcmp.eq.f32.partialorder %v1589, 8.507059e+37
    %v1591 = vand.u32 %v1530, 2147483648
    %v1592 = vor.u32 1.1754944e-38, %v1591
    %v1593 = vsel %vm1590, %v1592, %v1588
    %v1594 = vmul.f32 1.0, %v1593
    %v1595 = vrcp.pop %v1531
    %v1596 = vmul.f32 %v1531, %v1595
    %v1597 = vsub.f32 1.0, %v1596
    %v1598 = vmul.f32 %v1595, %v1597
    %v1599 = vadd.f32 %v1595, %v1598
    %vm1600 = vweird.f32 %v1531
    %vm1601 = vweird.f32 %v1595
    %vm1602 = vmor %vm1600, %vm1601
    %v1603 = vsel %vm1602, %v1595, %v1599
    %v1604 = vand.u32 2147483647, %v1531
    %vm1605 = vcmp.eq.f32.partialorder %v1604, 8.507059e+37
    %v1606 = vand.u32 %v1531, 2147483648
    %v1607 = vor.u32 1.1754944e-38, %v1606
    %v1608 = vsel %vm1605, %v1607, %v1603
    %v1609 = vmul.f32 1.0, %v1608
    %v1610 = vrcp.pop %v1532
    %v1611 = vmul.f32 %v1532, %v1610
    %v1612 = vsub.f32 1.0, %v1611
    %v1613 = vmul.f32 %v1610, %v1612
    %v1614 = vadd.f32 %v1610, %v1613
    %vm1615 = vweird.f32 %v1532
    %vm1616 = vweird.f32 %v1610
    %vm1617 = vmor %vm1615, %vm1616
    %v1618 = vsel %vm1617, %v1610, %v1614
    %v1619 = vand.u32 2147483647, %v1532
    %vm1620 = vcmp.eq.f32.partialorder %v1619, 8.507059e+37
    %v1621 = vand.u32 %v1532, 2147483648
    %v1622 = vor.u32 1.1754944e-38, %v1621
    %v1623 = vsel %vm1620, %v1622, %v1618
    %v1624 = vmul.f32 1.0, %v1623
    %v1625 = vrcp.pop %v1533
    %v1626 = vmul.f32 %v1533, %v1625
    %v1627 = vsub.f32 1.0, %v1626
    %v1628 = vmul.f32 %v1625, %v1627
    %v1629 = vadd.f32 %v1625, %v1628
    %vm1630 = vweird.f32 %v1533
    %vm1631 = vweird.f32 %v1625
    %vm1632 = vmor %vm1630, %vm1631
    %v1633 = vsel %vm1632, %v1625, %v1629
    %v1634 = vand.u32 2147483647, %v1533
    %vm1635 = vcmp.eq.f32.partialorder %v1634, 8.507059e+37
    %v1636 = vand.u32 %v1533, 2147483648
    %v1637 = vor.u32 1.1754944e-38, %v1636
    %v1638 = vsel %vm1635, %v1637, %v1633
    %v1639 = vmul.f32 1.0, %v1638
    %v1640 = vrcp.pop %v1534
    %v1641 = vmul.f32 %v1534, %v1640
    %v1642 = vsub.f32 1.0, %v1641
    %v1643 = vmul.f32 %v1640, %v1642
    %v1644 = vadd.f32 %v1640, %v1643
    %vm1645 = vweird.f32 %v1534
    %vm1646 = vweird.f32 %v1640
    %vm1647 = vmor %vm1645, %vm1646
    %v1648 = vsel %vm1647, %v1640, %v1644
    %v1649 = vand.u32 2147483647, %v1534
    %vm1650 = vcmp.eq.f32.partialorder %v1649, 8.507059e+37
    %v1651 = vand.u32 %v1534, 2147483648
    %v1652 = vor.u32 1.1754944e-38, %v1651
    %v1653 = vsel %vm1650, %v1652, %v1648
    %v1654 = vmul.f32 1.0, %v1653
    %v1655 = vsub.f32 1.0, %v1639
    %v1656 = vsub.f32 1.0, %v1654
    %v1657 = vmul.f32 %v1005, %v1209
    %v1658 = vmul.f32 %v1006, %v1224
    %v1659 = vadd.f32 %v989, %v1657
    %v1660 = vadd.f32 %v1004, %v1658
    %v1661 = vmul.f32 %v1659, %v1655
    %v1662 = vmul.f32 %v1660, %v1656
    %v1663 = vmul.f32 %v1639, %v1549
    %v1664 = vmul.f32 %v1654, %v1564
    %v1665 = vadd.f32 %v1661, %v1663
    %v1666 = vadd.f32 %v1662, %v1664
    %v1667 = vmul.f32 %v1665, 2.0
    %v1668 = vmul.f32 %v1666, 2.0
    %v1669 = vsub.f32 %v1667, 1.0
    %v1670 = vsub.f32 %v1668, 1.0
    %1671 = vst [vmem:[#allocation8] sm:$0xff] %v1669
    %1672 = vst [vmem:[#allocation8 + $0x8] sm:$0xff] %v1670
    %v1673 = vmul.f32 %v1005, %v1239
    %v1674 = vmul.f32 %v1006, %v1254
    %v1675 = vadd.f32 %v989, %v1673
    %v1676 = vadd.f32 %v1004, %v1674
    %v1677 = vmul.f32 %v1675, %v1655
    %v1678 = vmul.f32 %v1676, %v1656
    %v1679 = vmul.f32 %v1639, %v1579
    %v1680 = vmul.f32 %v1654, %v1594
    %v1681 = vadd.f32 %v1677, %v1679
    %v1682 = vadd.f32 %v1678, %v1680
    %v1683 = vmul.f32 %v1681, 2.0
    %v1684 = vmul.f32 %v1682, 2.0
    %v1685 = vsub.f32 %v1683, 1.0
    %v1686 = vsub.f32 %v1684, 1.0
    %1687 = vst [vmem:[#allocation8 + $0x10] sm:$0xff] %v1685
    %1688 = vst [vmem:[#allocation8 + $0x18] sm:$0xff] %v1686
    %v1689 = vmul.f32 %v1005, %v1269
    %v1690 = vmul.f32 %v1006, %v1284
    %v1691 = vadd.f32 %v989, %v1689
    %v1692 = vadd.f32 %v1004, %v1690
    %v1693 = vmul.f32 %v1691, %v1655
    %v1694 = vmul.f32 %v1692, %v1656
    %v1695 = vmul.f32 %v1639, %v1609
    %v1696 = vmul.f32 %v1654, %v1624
    %v1697 = vadd.f32 %v1693, %v1695
    %v1698 = vadd.f32 %v1694, %v1696
    %v1699 = vmul.f32 %v1697, 2.0
    %v1700 = vmul.f32 %v1698, 2.0
    %v1701 = vsub.f32 %v1699, 1.0
    %v1702 = vsub.f32 %v1700, 1.0
    %1703 = vst [vmem:[#allocation8 + $0x20] sm:$0xff] %v1701
    %1704 = vst [vmem:[#allocation8 + $0x28] sm:$0xff] %v1702
    // Predicated region
    $region26: #{tpu_custom_call.1} parent=1 // pred_check
      _
    $region27: #{tpu_custom_call.1} parent=1 // pred_check_branch
      %1706 = sbr.rel (0) target = $region29
    $region28: #{tpu_custom_call.1} parent=1 // pred_region
      %1708 = vsyncadd [#allocation4], 0
      %s1710 = sshll.u32 [#allocation8], 4
      %s1711 = int_to_ptr.vmem [resolvable:$true] %s1710
      %s1712 = sshll.u32 %s3, 4
      %s1713 = int_to_ptr.hbm [resolvable:$true] %s1712
      %1715 = dma.vmem_to_hbm [thread:$0]  %s1711, 768, %s1713, [#allocation4]
    $region29: #{tpu_custom_call.1} parent=1 // pred_fallthru
      _
    // Predicated region
    $region30: #{tpu_custom_call.1} parent=1 // pred_check
      _
    $region31: #{tpu_custom_call.1} parent=1 // pred_check_branch
      %1717 = sbr.rel (0) target = $region33
    $region32: #{tpu_custom_call.1} parent=1 // pred_region
      %1719 = dma.done [#allocation4], 768
    $region33: #{tpu_custom_call.1} parent=1 // pred_fallthru
      _
    %1720 = vsyncpa [#allocation3], 1
    %1721 = vsyncpa [#allocation6], 1
    %1722 = vsyncpa [#allocation4], 1

</llo_original>
